<compile_context>
chip_gen: v7x
topology: tpu7x:2x2x1
jax: 0.10.0
libtpu: 0.0.40
codegen_flags: <defaults>
</compile_context>

<pallas_src>
import jax
import jax.numpy as jnp
from jax import lax
from jax.experimental import pallas as pl
from jax.experimental.pallas import tpu as pltpu

BETA = 1.0                      # beta in get_clust_score_pytorch
LEAKY_ALPHA = 0.2               # GAT LeakyReLU negative slope
NEG_BIG = -9e15                 # adjacency mask value (matches the torch code)
PACK = 128                      # lane-dense packed-buffer width
VMEM_LIMIT = 48 * 1024 * 1024   # < v7x 64 MiB physical VMEM; raise on v6e

NT_DIMS = (((1,), (1,)), ((), ()))   # contract last dims:  A @ B^T
TN_DIMS = (((0,), (0,)), ((), ()))   # contract first dims: A^T @ B


def _dist_softmax(feat, cent):
    """Row-softmax of -beta * ||feat - cent_k||_2 (get_clust_score_pytorch)."""
    ones_row = jnp.ones((1, cent.shape[1]), jnp.float32)
    c2 = lax.dot_general(ones_row, cent * cent, NT_DIMS,
                         preferred_element_type=jnp.float32)            # (1,K)
    f2 = jnp.sum(feat * feat, axis=1, keepdims=True)                     # (R,1)
    cross = lax.dot_general(feat, cent, NT_DIMS,
                            preferred_element_type=jnp.float32)          # (R,K)
    d = jnp.sqrt(jnp.maximum(f2 + c2 - 2.0 * cross, 0.0))
    s = jnp.exp(-BETA * d) + 1e-10
    return s * pl.reciprocal(jnp.sum(s, axis=1, keepdims=True), approx=True)


def gib_large_forward(x, support, y, C_b_prime, Q, params,
                      *, row_tile=128, key_tile=128):
    """GIB_large.forward (update=True, f0mlp=True, b1in=False)."""
    N, D = x.shape
    H = params["W_gat"].shape[1]
    O = params["W_gcn"].shape[1]
    C = C_b_prime.shape[0]

    assert N % row_tile == 0 and N % key_tile == 0 and key_tile % 128 == 0, \
        "N must be a multiple of the tiles (key tile lane-aligned)"
    assert H + 2 <= PACK and O + C <= PACK
    nI, nJ = N // row_tile, N // key_tile
    o_m, o_l = H, H + 1                 # packed softmax-stat lanes
    inv_n = 1.0 / float(N)

    # ----- hoisted per-call constants (kept off the kernels' critical path) ---
    y = y.astype(jnp.int32)
    yoh = jax.nn.one_hot(y, C, dtype=jnp.float32)                        # (N,C)
    ylq = yoh @ jnp.log(jnp.maximum(Q.astype(jnp.float32), 1e-30))       # (N,C)
    sup_bf = support.astype(jnp.bfloat16)       # bf16 N^2 stream
    wg = params["W_gat"].astype(jnp.bfloat16)   # MXU-only weights as bf16
    wfc = params["W_fc"].astype(jnp.bfloat16)
    wgcn = params["W_gcn"].astype(jnp.bfloat16)
    a1 = params["a1_row"].astype(jnp.float32)   # VPU-side vectors stay f32
    a2 = params["a2_row"].astype(jnp.float32)
    bfc = params["b_fc"].astype(jnp.float32)
    x = x.astype(jnp.float32)
    cb = C_b_prime.astype(jnp.float32)

    # ==================== K1: GAT attention (online softmax) =================
    def attn_kernel(xi_ref, xj_ref, sup_ref, wg_ref, a1_ref, a2_ref, wgcn_ref,
                    pk_ref, xw_ref, f0_s, m_s, l_s, acc_s):
        j = pl.program_id(1)

        @pl.when(j == 0)
        def _():
            f0_s[...] = jnp.dot(xi_ref[...].astype(jnp.bfloat16), wg_ref[...],
                                preferred_element_type=jnp.float32)
            m_s[...] = jnp.full_like(m_s, NEG_BIG)
            l_s[...] = jnp.zeros_like(l_s)
            acc_s[...] = jnp.zeros_like(acc_s)

        # Key-tile features recomputed from x_j: cheap 32-deep MXU work riding
        # in idle MXU slots of this VPU/EUP-bound region (no (N,H) HBM buffer).
        f0j = jnp.dot(xj_ref[...].astype(jnp.bfloat16), wg_ref[...],
                      preferred_element_type=jnp.float32)                 # (Tk,H)
        e_src = jnp.sum(f0_s[...] * a1_ref[...], axis=1, keepdims=True)   # (Tr,1)
        # (1,Tk) logit row via an M=1 NT matmul; kept on the MXU because the
        # VPU-reduce alternative needs a (Tk,1)->(1,Tk) relayout.
        e_dst = lax.dot_general(a2_ref[...], f0j, NT_DIMS,
                                preferred_element_type=jnp.float32)       # (1,Tk)
        e = e_src + e_dst
        e = jnp.where(e > 0, e, LEAKY_ALPHA * e)                          # LeakyReLU
        e = jnp.where(sup_ref[...] > 0, e, NEG_BIG)                       # adj mask
        m_prev = m_s[...]
        m_new = jnp.maximum(m_prev, jnp.max(e, axis=1, keepdims=True))
        alpha = jnp.exp(m_prev - m_new)
        p = jnp.exp(e - m_new)
        l_s[...] = alpha * l_s[...] + jnp.sum(p, axis=1, keepdims=True)
        acc_s[...] = alpha * acc_s[...] + jnp.dot(
            p.astype(jnp.bfloat16), f0j.astype(jnp.bfloat16),
            preferred_element_type=jnp.float32)
        m_s[...] = m_new

        @pl.when(j == pl.num_programs(1) - 1)
        def _():
            z0 = acc_s[...] * pl.reciprocal(l_s[...], approx=True)
            gat = jnp.where(z0 > 0, z0, jnp.exp(jnp.minimum(z0, 0.0)) - 1.0)  # ELU
            xw = jnp.dot(gat.astype(jnp.bfloat16), wgcn_ref[...],
                         preferred_element_type=jnp.float32)              # (Tr,O)
            pad = jnp.zeros((z0.shape[0], PACK - (H + 2)), jnp.float32)
            # lane-dense packed per-node buffer: [Z_0 | m | l | 0-pad]
            pk_ref[...] = jnp.concatenate([z0, m_s[...], l_s[...], pad], axis=1)
            xw_ref[...] = xw.astype(jnp.bfloat16)

    pack_q, xw = pl.pallas_call(
        attn_kernel,
        out_shape=(jax.ShapeDtypeStruct((N, PACK), jnp.float32),
                   jax.ShapeDtypeStruct((N, O), jnp.bfloat16)),
        grid=(nI, nJ),
        in_specs=[pl.BlockSpec((row_tile, D), lambda i, j: (i, 0)),     # x (queries)
                  pl.BlockSpec((key_tile, D), lambda i, j: (j, 0)),     # x (keys)
                  pl.BlockSpec((row_tile, key_tile), lambda i, j: (i, j)),
                  pl.BlockSpec((D, H), lambda i, j: (0, 0)),
                  pl.BlockSpec((1, H), lambda i, j: (0, 0)),
                  pl.BlockSpec((1, H), lambda i, j: (0, 0)),
                  pl.BlockSpec((H, O), lambda i, j: (0, 0))],
        out_specs=(pl.BlockSpec((row_tile, PACK), lambda i, j: (i, 0)),
                   pl.BlockSpec((row_tile, O), lambda i, j: (i, 0))),
        scratch_shapes=[pltpu.VMEM((row_tile, H), jnp.float32),   # F_0 rows
                        pltpu.VMEM((row_tile, 1), jnp.float32),   # m
                        pltpu.VMEM((row_tile, 1), jnp.float32),   # l
                        pltpu.VMEM((row_tile, H), jnp.float32)],  # Z_0 acc
        compiler_params=pltpu.CompilerParams(
            dimension_semantics=("parallel", "arbitrary"),
            vmem_limit_bytes=VMEM_LIMIT),
    )(x, x, sup_bf, wg, a1, a2, wgcn)

    # ==================== K2: class means C_a (label-seeded kmeans surrogate) =
    def class_mean_kernel(pk_ref, yoh_ref, ca_ref, acc_s, cnt_s):
        i = pl.program_id(0)

        @pl.when(i == 0)
        def _():
            acc_s[...] = jnp.zeros_like(acc_s)
            cnt_s[...] = jnp.zeros_like(cnt_s)

        z0 = pk_ref[...][:, 0:H]
        yoh_t = yoh_ref[...]
        acc_s[...] += lax.dot_general(yoh_t, z0, TN_DIMS,
                                      preferred_element_type=jnp.float32)  # (C,H)
        ones = jnp.ones((yoh_t.shape[0], 1), jnp.float32)
        cnt_s[...] += lax.dot_general(yoh_t, ones, TN_DIMS,
                                      preferred_element_type=jnp.float32)  # (C,1)

        @pl.when(i == pl.num_programs(0) - 1)
        def _():
            # empty-class guard; one-off (C,H) divide, not perf relevant
            ca_ref[...] = acc_s[...] / jnp.maximum(cnt_s[...], 1.0)

    c_a = pl.pallas_call(
        class_mean_kernel,
        out_shape=jax.ShapeDtypeStruct((C, H), jnp.float32),
        grid=(nI,),
        in_specs=[pl.BlockSpec((row_tile, PACK), lambda i: (i, 0)),
                  pl.BlockSpec((row_tile, C), lambda i: (i, 0))],
        out_specs=pl.BlockSpec((C, H), lambda i: (0, 0)),
        scratch_shapes=[pltpu.VMEM((C, H), jnp.float32),
                        pltpu.VMEM((C, 1), jnp.float32)],
        compiler_params=pltpu.CompilerParams(
            dimension_semantics=("arbitrary",),
            vmem_limit_bytes=VMEM_LIMIT),
    )(pack_q, yoh)

    # ==================== K3: F_1 = ReLU(support @ XW) ========================
    def gcn_kernel(sup_ref, xw_ref, f1_ref, acc_s):
        k = pl.program_id(1)

        @pl.when(k == 0)
        def _():
            acc_s[...] = jnp.zeros_like(acc_s)

        acc_s[...] += jnp.dot(sup_ref[...], xw_ref[...],
                              preferred_element_type=jnp.float32)

        @pl.when(k == pl.num_programs(1) - 1)
        def _():
            f1_ref[...] = jnp.maximum(acc_s[...], 0.0).astype(f1_ref.dtype)

    f1 = pl.pallas_call(
        gcn_kernel,
        out_shape=jax.ShapeDtypeStruct((N, O), jnp.bfloat16),
        grid=(nI, nJ),
        in_specs=[pl.BlockSpec((row_tile, key_tile), lambda i, k: (i, k)),
                  pl.BlockSpec((key_tile, O), lambda i, k: (k, 0))],
        out_specs=pl.BlockSpec((row_tile, O), lambda i, k: (i, 0)),
        scratch_shapes=[pltpu.VMEM((row_tile, O), jnp.float32)],
        compiler_params=pltpu.CompilerParams(
            dimension_semantics=("parallel", "arbitrary"),
            vmem_limit_bytes=VMEM_LIMIT),
    )(sup_bf, xw)

    # ==================== K4: IB gradient, B_1, Z_1, phi_Z_a ==================
    def head_kernel(pk_ref, xi_ref, xj_ref, sup_ref, f1_ref, cb_ref, ca_ref,
                    ylq_ref, wg_ref, wfc_ref, bfc_ref, a1_ref, a2_ref,
                    out_ref, v_s, es_s, invl_s, ss_s, z1_s, phi_s):
        j = pl.program_id(1)
        pk = pk_ref[...]
        z0 = pk[:, 0:H]
        m_i = pk[:, o_m:o_m + 1]

        @pl.when(j == 0)
        def _():
            l_i = pk[:, o_l:o_l + 1]
            ca = ca_ref[...]
            phi_z = _dist_softmax(z0, ca)                                  # (Tr,C)
            phi_x = _dist_softmax(xi_ref[...], cb_ref[...])                # (Tr,C)
            slp = jnp.sum(jnp.log(phi_x), axis=1, keepdims=True)          # (Tr,1)
            diff_b = phi_z * slp - ylq_ref[...]
            w = diff_b * phi_z
            v = (jnp.sum(w, axis=1, keepdims=True) * z0
                 - jnp.dot(w, ca, preferred_element_type=jnp.float32))
            v_s[...] = v * inv_n                   # fold 1/n of the IB gradient
            f0i = jnp.dot(xi_ref[...].astype(jnp.bfloat16), wg_ref[...],
                          preferred_element_type=jnp.float32)
            es_s[...] = jnp.sum(f0i * a1_ref[...], axis=1, keepdims=True)
            invl_s[...] = pl.reciprocal(l_i, approx=True)
            ss_s[...] = jnp.zeros_like(ss_s)
            z1_s[...] = jnp.zeros_like(z1_s)
            phi_s[...] = phi_z

        # Recompute key-tile F_0 / fc_0(F_0) and the B0 tile from the stored
        # softmax stats (m, l) -- cheaper than writing the (N,N) attention
        # matrix to HBM and reading it back.
        f0j = jnp.dot(xj_ref[...].astype(jnp.bfloat16), wg_ref[...],
                      preferred_element_type=jnp.float32)                  # (Tk,H)
        f0fcj = jnp.dot(f0j.astype(jnp.bfloat16), wfc_ref[...],
                        preferred_element_type=jnp.float32) + bfc_ref[...] # (Tk,H)
        e_dst = lax.dot_general(a2_ref[...], f0j, NT_DIMS,
                                preferred_element_type=jnp.float32)        # (1,Tk)
        e = es_s[...] + e_dst
        e = jnp.where(e > 0, e, LEAKY_ALPHA * e)
        e = jnp.where(sup_ref[...] > 0, e, NEG_BIG)
        b0 = jnp.exp(e - m_i) * invl_s[...]                                # (Tr,Tk)

        grad = lax.dot_general(v_s[...].astype(jnp.bfloat16),
                               f0fcj.astype(jnp.bfloat16), NT_DIMS,
                               preferred_element_type=jnp.float32)         # (Tr,Tk)
        b1 = b0 - grad
        ss_s[...] += jnp.sum(b1 * b1, axis=1, keepdims=True)
        z1_s[...] += jnp.dot(b1.astype(jnp.bfloat16), f1_ref[...],
                             preferred_element_type=jnp.float32)           # (Tr,O)

        @pl.when(j == pl.num_programs(1) - 1)
        def _():
            inv_norm = lax.rsqrt(jnp.maximum(ss_s[...], 1e-24))   # row-L2 guard
            z1 = z1_s[...] * inv_norm
            pad = jnp.zeros((z1.shape[0], PACK - (O + C)), jnp.float32)
            # lane-dense packed output: [Z_1 | phi_Z_a | 0-pad]
            out_ref[...] = jnp.concatenate([z1, phi_s[...], pad], axis=1)

    head_out = pl.pallas_call(
        head_kernel,
        out_shape=jax.ShapeDtypeStruct((N, PACK), jnp.float32),
        grid=(nI, nJ),
        in_specs=[pl.BlockSpec((row_tile, PACK), lambda i, j: (i, 0)),   # packed rows
                  pl.BlockSpec((row_tile, D), lambda i, j: (i, 0)),      # x rows
                  pl.BlockSpec((key_tile, D), lambda i, j: (j, 0)),      # x keys
                  pl.BlockSpec((row_tile, key_tile), lambda i, j: (i, j)),
                  pl.BlockSpec((key_tile, O), lambda i, j: (j, 0)),      # F_1 keys
                  pl.BlockSpec((C, D), lambda i, j: (0, 0)),             # C_b'
                  pl.BlockSpec((C, H), lambda i, j: (0, 0)),             # C_a
                  pl.BlockSpec((row_tile, C), lambda i, j: (i, 0)),      # yoh@logQ
                  pl.BlockSpec((D, H), lambda i, j: (0, 0)),
                  pl.BlockSpec((H, H), lambda i, j: (0, 0)),
                  pl.BlockSpec((1, H), lambda i, j: (0, 0)),
                  pl.BlockSpec((1, H), lambda i, j: (0, 0)),
                  pl.BlockSpec((1, H), lambda i, j: (0, 0))],
        out_specs=pl.BlockSpec((row_tile, PACK), lambda i, j: (i, 0)),
        scratch_shapes=[pltpu.VMEM((row_tile, H), jnp.float32),   # v / n
                        pltpu.VMEM((row_tile, 1), jnp.float32),   # e_src
                        pltpu.VMEM((row_tile, 1), jnp.float32),   # 1 / l
                        pltpu.VMEM((row_tile, 1), jnp.float32),   # sum b1^2
                        pltpu.VMEM((row_tile, O), jnp.float32),   # Z_1 acc
                        pltpu.VMEM((row_tile, C), jnp.float32)],  # phi_Z_a
        compiler_params=pltpu.CompilerParams(
            dimension_semantics=("parallel", "arbitrary"),
            vmem_limit_bytes=VMEM_LIMIT),
    )(pack_q, x, x, sup_bf, f1, cb, c_a, ylq, wg, wfc, bfc, a1, a2)

    z0 = pack_q[:, 0:H]
    z1 = head_out[:, 0:O]
    phi = head_out[:, O:O + C]
    output = z1                       # b1in=False: output == Z_1
    return output, z1, z0, phi


# --------------------------------------------------------------------------
# Deterministic parameter / input construction and a single run.
# --------------------------------------------------------------------------
def init_params(key, input_dim, hidden_dim, output_dim):
    ks = jax.random.split(key, 6)
    return {
        "W_gat":  0.1 * jax.random.normal(ks[0], (input_dim, hidden_dim), jnp.float32),
        "a1_row": 0.1 * jax.random.normal(ks[1], (1, hidden_dim), jnp.float32),
        "a2_row": 0.1 * jax.random.normal(ks[2], (1, hidden_dim), jnp.float32),
        "W_fc":   0.1 * jax.random.normal(ks[3], (hidden_dim, hidden_dim), jnp.float32),
        "b_fc":   jnp.zeros((1, hidden_dim), jnp.float32),
        "W_gcn":  0.1 * jax.random.normal(ks[4], (hidden_dim, output_dim), jnp.float32),
    }


if __name__ == "__main__":
    N, D, H, O = 256, 32, 32, 16          # N multiple of the 128-wide key tile
    num_classes = 4

    key = jax.random.PRNGKey(0)
    k_x, k_adj, k_cb, k_q, k_par = jax.random.split(key, 5)

    x = jax.random.normal(k_x, (N, D), jnp.float32)

    # symmetric random adjacency with self-loops; support = row-normalized adj
    a = (jax.random.uniform(k_adj, (N, N)) < 0.1).astype(jnp.float32)
    adj = jnp.clip(a + a.T + jnp.eye(N, dtype=jnp.float32), 0.0, 1.0)
    support = adj / jnp.sum(adj, axis=1, keepdims=True)

    y = jnp.arange(N, dtype=jnp.int32) % num_classes
    C_b_prime = jax.random.normal(k_cb, (num_classes, D), jnp.float32)
    Q = jax.nn.softmax(jax.random.normal(k_q, (num_classes, num_classes),
                                         jnp.float32), axis=1)

    params = init_params(k_par, D, H, O)

    output, Z1, Z0, Z0_score = gib_large_forward(
        x, support, y, C_b_prime, Q, params)
    jax.block_until_ready((output, Z1, Z0, Z0_score))

    assert output.shape == (N, O) and Z1.shape == (N, O)
    assert Z0.shape == (N, H) and Z0_score.shape == (N, num_classes)
    assert bool(jnp.all(jnp.isfinite(output)))
    assert bool(jnp.all(jnp.isfinite(Z0)))
    assert bool(jnp.all(jnp.isfinite(Z0_score)))
    print("KERNEL_OK")
</pallas_src>

<mosaic_0001>
module attributes {stable_mosaic.version = 11 : i64} {
  func.func @attn_kernel(%arg0: i32, %arg1: i32, %arg2: memref<128x32xf32, #tpu.memory_space<vmem>>, %arg3: memref<128x32xf32, #tpu.memory_space<vmem>>, %arg4: memref<128x128xbf16, #tpu.memory_space<vmem>>, %arg5: memref<32x32xbf16, #tpu.memory_space<vmem>>, %arg6: memref<1x32xf32, #tpu.memory_space<vmem>>, %arg7: memref<1x32xf32, #tpu.memory_space<vmem>>, %arg8: memref<32x16xbf16, #tpu.memory_space<vmem>>, %arg9: memref<128x128xf32, #tpu.memory_space<vmem>>, %arg10: memref<128x16xbf16, #tpu.memory_space<vmem>>, %arg11: memref<128x32xf32, #tpu.memory_space<vmem>>, %arg12: memref<128x1xf32, #tpu.memory_space<vmem>>, %arg13: memref<128x1xf32, #tpu.memory_space<vmem>>, %arg14: memref<128x32xf32, #tpu.memory_space<vmem>>) attributes {dimension_semantics = [#tpu.dimension_semantics<parallel>, #tpu.dimension_semantics<arbitrary>], iteration_bounds = array<i64: 2, 2>, scalar_prefetch = 0 : i64, scratch_operands = 4 : i64, tpu.core_type = #tpu.core_type<tc>, window_params = [{transform_indices = @transform_0, window_bounds = array<i64: 128, 32>}, {transform_indices = @transform_1, window_bounds = array<i64: 128, 32>}, {transform_indices = @transform_2, window_bounds = array<i64: 128, 128>}, {pipeline_mode = #tpu.pipeline_mode<synchronous>, transform_indices = @transform_3, window_bounds = array<i64: 32, 32>}, {pipeline_mode = #tpu.pipeline_mode<synchronous>, transform_indices = @transform_4, window_bounds = array<i64: 1, 32>}, {pipeline_mode = #tpu.pipeline_mode<synchronous>, transform_indices = @transform_5, window_bounds = array<i64: 1, 32>}, {pipeline_mode = #tpu.pipeline_mode<synchronous>, transform_indices = @transform_6, window_bounds = array<i64: 32, 16>}, {transform_indices = @transform_7, window_bounds = array<i64: 128, 128>}, {transform_indices = @transform_8, window_bounds = array<i64: 128, 16>}]} {
    %c0_i32 = arith.constant 0 : i32
    %0 = arith.cmpi eq, %arg1, %c0_i32 : i32
    %1 = arith.extui %0 : i1 to i32
    %c0_i32_0 = arith.constant 0 : i32
    %2 = arith.cmpi ne, %1, %c0_i32_0 : i32
    scf.if %2 {
      %c0_34 = arith.constant 0 : index
      %c0_35 = arith.constant 0 : index
      %55 = vector.load %arg2[%c0_34, %c0_35] : memref<128x32xf32, #tpu.memory_space<vmem>>, vector<128x32xf32>
      %56 = arith.truncf %55 : vector<128x32xf32> to vector<128x32xbf16>
      %c0_36 = arith.constant 0 : index
      %c0_37 = arith.constant 0 : index
      %57 = vector.load %arg5[%c0_36, %c0_37] : memref<32x32xbf16, #tpu.memory_space<vmem>>, vector<32x32xbf16>
      %cst_38 = arith.constant dense<0.000000e+00> : vector<128x32xf32>
      %58 = tpu.matmul %56, %57, %cst_38 {dimension_numbers = #tpu.dot_dimension_numbers<[1], [0], [0], [1], [0, 0, 1, 1], [], []>} : vector<128x32xbf16>, vector<32x32xbf16>, vector<128x32xf32> -> vector<128x32xf32>
      %c0_39 = arith.constant 0 : index
      %c0_40 = arith.constant 0 : index
      %59 = vector.load %arg11[%c0_39, %c0_40] : memref<128x32xf32, #tpu.memory_space<vmem>>, vector<128x32xf32>
      tpu.vector_store %arg11[%c0_39, %c0_40], %58 {strides = array<i32>} : memref<128x32xf32, #tpu.memory_space<vmem>>, vector<128x32xf32>,
      %cst_41 = arith.constant -9.000000e+15 : f32
      %60 = vector.broadcast %cst_41 : f32 to vector<128x1xf32>
      %c0_42 = arith.constant 0 : index
      %c0_43 = arith.constant 0 : index
      %61 = vector.load %arg12[%c0_42, %c0_43] : memref<128x1xf32, #tpu.memory_space<vmem>>, vector<128x1xf32>
      tpu.vector_store %arg12[%c0_42, %c0_43], %60 {strides = array<i32>} : memref<128x1xf32, #tpu.memory_space<vmem>>, vector<128x1xf32>,
      %cst_44 = arith.constant 0.000000e+00 : f32
      %62 = vector.broadcast %cst_44 : f32 to vector<128x1xf32>
      %c0_45 = arith.constant 0 : index
      %c0_46 = arith.constant 0 : index
      %63 = vector.load %arg13[%c0_45, %c0_46] : memref<128x1xf32, #tpu.memory_space<vmem>>, vector<128x1xf32>
      tpu.vector_store %arg13[%c0_45, %c0_46], %62 {strides = array<i32>} : memref<128x1xf32, #tpu.memory_space<vmem>>, vector<128x1xf32>,
      %cst_47 = arith.constant 0.000000e+00 : f32
      %64 = vector.broadcast %cst_47 : f32 to vector<128x32xf32>
      %c0_48 = arith.constant 0 : index
      %c0_49 = arith.constant 0 : index
      %65 = vector.load %arg14[%c0_48, %c0_49] : memref<128x32xf32, #tpu.memory_space<vmem>>, vector<128x32xf32>
      tpu.vector_store %arg14[%c0_48, %c0_49], %64 {strides = array<i32>} : memref<128x32xf32, #tpu.memory_space<vmem>>, vector<128x32xf32>,
    } else {
    }
    %c0 = arith.constant 0 : index
    %c0_1 = arith.constant 0 : index
    %3 = vector.load %arg3[%c0, %c0_1] : memref<128x32xf32, #tpu.memory_space<vmem>>, vector<128x32xf32>
    %4 = arith.truncf %3 : vector<128x32xf32> to vector<128x32xbf16>
    %c0_2 = arith.constant 0 : index
    %c0_3 = arith.constant 0 : index
    %5 = vector.load %arg5[%c0_2, %c0_3] : memref<32x32xbf16, #tpu.memory_space<vmem>>, vector<32x32xbf16>
    %cst = arith.constant dense<0.000000e+00> : vector<128x32xf32>
    %6 = tpu.matmul %4, %5, %cst {dimension_numbers = #tpu.dot_dimension_numbers<[1], [0], [0], [1], [0, 0, 1, 1], [], []>} : vector<128x32xbf16>, vector<32x32xbf16>, vector<128x32xf32> -> vector<128x32xf32>
    %c0_4 = arith.constant 0 : index
    %c0_5 = arith.constant 0 : index
    %7 = vector.load %arg11[%c0_4, %c0_5] : memref<128x32xf32, #tpu.memory_space<vmem>>, vector<128x32xf32>
    %c0_6 = arith.constant 0 : index
    %c0_7 = arith.constant 0 : index
    %8 = vector.load %arg6[%c0_6, %c0_7] : memref<1x32xf32, #tpu.memory_space<vmem>>, vector<1x32xf32>
    %9 = vector.broadcast %8 : vector<1x32xf32> to vector<128x32xf32>
    %10 = arith.mulf %7, %9 : vector<128x32xf32>
    %cst_8 = arith.constant dense<0.000000e+00> : vector<128xf32>
    %11 = vector.multi_reduction <add>, %10, %cst_8 [1] : vector<128x32xf32> to vector<128xf32>
    %12 = vector.shape_cast %11 : vector<128xf32> to vector<128x1xf32>
    %c0_9 = arith.constant 0 : index
    %c0_10 = arith.constant 0 : index
    %13 = vector.load %arg7[%c0_9, %c0_10] : memref<1x32xf32, #tpu.memory_space<vmem>>, vector<1x32xf32>
    %cst_11 = arith.constant dense<0.000000e+00> : vector<1x128xf32>
    %14 = tpu.matmul %13, %6, %cst_11 {dimension_numbers = #tpu.dot_dimension_numbers<[1], [1], [0], [0], [0, 0, 1, 0], [], []>} : vector<1x32xf32>, vector<128x32xf32>, vector<1x128xf32> -> vector<1x128xf32>
    %15 = vector.broadcast %12 : vector<128x1xf32> to vector<128x128xf32>
    %16 = vector.broadcast %14 : vector<1x128xf32> to vector<128x128xf32>
    %17 = arith.addf %15, %16 : vector<128x128xf32>
    %cst_12 = arith.constant 0.000000e+00 : f32
    %18 = vector.broadcast %cst_12 : f32 to vector<128x128xf32>
    %19 = arith.cmpf ogt, %17, %18 : vector<128x128xf32>
    %cst_13 = arith.constant 2.000000e-01 : f32
    %20 = vector.broadcast %cst_13 : f32 to vector<128x128xf32>
    %21 = arith.mulf %20, %17 : vector<128x128xf32>
    %22 = arith.select %19, %17, %21 : vector<128x128xi1>, vector<128x128xf32>
    %c0_14 = arith.constant 0 : index
    %c0_15 = arith.constant 0 : index
    %23 = vector.load %arg4[%c0_14, %c0_15] : memref<128x128xbf16, #tpu.memory_space<vmem>>, vector<128x128xbf16>
    %cst_16 = arith.constant 0.000000e+00 : bf16
    %24 = vector.broadcast %cst_16 : bf16 to vector<128x128xbf16>
    %25 = arith.cmpf ogt, %23, %24 : vector<128x128xbf16>
    %cst_17 = arith.constant -9.000000e+15 : f32
    %26 = vector.broadcast %cst_17 : f32 to vector<128x128xf32>
    %27 = arith.select %25, %22, %26 : vector<128x128xi1>, vector<128x128xf32>
    %c0_18 = arith.constant 0 : index
    %c0_19 = arith.constant 0 : index
    %28 = vector.load %arg12[%c0_18, %c0_19] : memref<128x1xf32, #tpu.memory_space<vmem>>, vector<128x1xf32>
    %cst_20 = arith.constant dense<0xFF800000> : vector<128xf32>
    %29 = vector.multi_reduction <maximumf>, %27, %cst_20 [1] : vector<128x128xf32> to vector<128xf32>
    %30 = vector.shape_cast %29 : vector<128xf32> to vector<128x1xf32>
    %31 = arith.maximumf %28, %30 : vector<128x1xf32>
    %32 = arith.subf %28, %31 : vector<128x1xf32>
    %33 = math.exp %32 : vector<128x1xf32>
    %34 = vector.broadcast %31 : vector<128x1xf32> to vector<128x128xf32>
    %35 = arith.subf %27, %34 : vector<128x128xf32>
    %36 = math.exp %35 : vector<128x128xf32>
    %c0_21 = arith.constant 0 : index
    %c0_22 = arith.constant 0 : index
    %37 = vector.load %arg13[%c0_21, %c0_22] : memref<128x1xf32, #tpu.memory_space<vmem>>, vector<128x1xf32>
    %38 = arith.mulf %33, %37 : vector<128x1xf32>
    %cst_23 = arith.constant dense<0.000000e+00> : vector<128xf32>
    %39 = vector.multi_reduction <add>, %36, %cst_23 [1] : vector<128x128xf32> to vector<128xf32>
    %40 = vector.shape_cast %39 : vector<128xf32> to vector<128x1xf32>
    %41 = arith.addf %38, %40 : vector<128x1xf32>
    %c0_24 = arith.constant 0 : index
    %c0_25 = arith.constant 0 : index
    %42 = vector.load %arg13[%c0_24, %c0_25] : memref<128x1xf32, #tpu.memory_space<vmem>>, vector<128x1xf32>
    tpu.vector_store %arg13[%c0_24, %c0_25], %41 {strides = array<i32>} : memref<128x1xf32, #tpu.memory_space<vmem>>, vector<128x1xf32>,
    %c0_26 = arith.constant 0 : index
    %c0_27 = arith.constant 0 : index
    %43 = vector.load %arg14[%c0_26, %c0_27] : memref<128x32xf32, #tpu.memory_space<vmem>>, vector<128x32xf32>
    %44 = vector.broadcast %33 : vector<128x1xf32> to vector<128x32xf32>
    %45 = arith.mulf %44, %43 : vector<128x32xf32>
    %46 = arith.truncf %36 : vector<128x128xf32> to vector<128x128xbf16>
    %47 = arith.truncf %6 : vector<128x32xf32> to vector<128x32xbf16>
    %cst_28 = arith.constant dense<0.000000e+00> : vector<128x32xf32>
    %48 = tpu.matmul %46, %47, %cst_28 {dimension_numbers = #tpu.dot_dimension_numbers<[1], [0], [0], [1], [0, 0, 1, 1], [], []>} : vector<128x128xbf16>, vector<128x32xbf16>, vector<128x32xf32> -> vector<128x32xf32>
    %49 = arith.addf %45, %48 : vector<128x32xf32>
    %c0_29 = arith.constant 0 : index
    %c0_30 = arith.constant 0 : index
    %50 = vector.load %arg14[%c0_29, %c0_30] : memref<128x32xf32, #tpu.memory_space<vmem>>, vector<128x32xf32>
    tpu.vector_store %arg14[%c0_29, %c0_30], %49 {strides = array<i32>} : memref<128x32xf32, #tpu.memory_space<vmem>>, vector<128x32xf32>,
    %c0_31 = arith.constant 0 : index
    %c0_32 = arith.constant 0 : index
    %51 = vector.load %arg12[%c0_31, %c0_32] : memref<128x1xf32, #tpu.memory_space<vmem>>, vector<128x1xf32>
    tpu.vector_store %arg12[%c0_31, %c0_32], %31 {strides = array<i32>} : memref<128x1xf32, #tpu.memory_space<vmem>>, vector<128x1xf32>,
    %c1_i32 = arith.constant 1 : i32
    %52 = arith.cmpi eq, %arg1, %c1_i32 : i32
    %53 = arith.extui %52 : i1 to i32
    %c0_i32_33 = arith.constant 0 : i32
    %54 = arith.cmpi ne, %53, %c0_i32_33 : i32
    scf.if %54 {
      %c0_34 = arith.constant 0 : index
      %c0_35 = arith.constant 0 : index
      %55 = vector.load %arg14[%c0_34, %c0_35] : memref<128x32xf32, #tpu.memory_space<vmem>>, vector<128x32xf32>
      %c0_36 = arith.constant 0 : index
      %c0_37 = arith.constant 0 : index
      %56 = vector.load %arg13[%c0_36, %c0_37] : memref<128x1xf32, #tpu.memory_space<vmem>>, vector<128x1xf32>
      %57 = tpu.reciprocal %56 {approx = true} : vector<128x1xf32> -> vector<128x1xf32>
      %58 = vector.broadcast %57 : vector<128x1xf32> to vector<128x32xf32>
      %59 = arith.mulf %55, %58 : vector<128x32xf32>
      %cst_38 = arith.constant 0.000000e+00 : f32
      %60 = vector.broadcast %cst_38 : f32 to vector<128x32xf32>
      %61 = arith.cmpf ogt, %59, %60 : vector<128x32xf32>
      %cst_39 = arith.constant 0.000000e+00 : f32
      %62 = vector.broadcast %cst_39 : f32 to vector<128x32xf32>
      %63 = arith.minimumf %59, %62 : vector<128x32xf32>
      %64 = math.exp %63 : vector<128x32xf32>
      %cst_40 = arith.constant 1.000000e+00 : f32
      %65 = vector.broadcast %cst_40 : f32 to vector<128x32xf32>
      %66 = arith.subf %64, %65 : vector<128x32xf32>
      %67 = arith.select %61, %59, %66 : vector<128x32xi1>, vector<128x32xf32>
      %68 = arith.truncf %67 : vector<128x32xf32> to vector<128x32xbf16>
      %c0_41 = arith.constant 0 : index
      %c0_42 = arith.constant 0 : index
      %69 = vector.load %arg8[%c0_41, %c0_42] : memref<32x16xbf16, #tpu.memory_space<vmem>>, vector<32x16xbf16>
      %cst_43 = arith.constant dense<0.000000e+00> : vector<128x16xf32>
      %70 = tpu.matmul %68, %69, %cst_43 {dimension_numbers = #tpu.dot_dimension_numbers<[1], [0], [0], [1], [0, 0, 1, 1], [], []>} : vector<128x32xbf16>, vector<32x16xbf16>, vector<128x16xf32> -> vector<128x16xf32>
      %cst_44 = arith.constant 0.000000e+00 : f32
      %71 = vector.broadcast %cst_44 : f32 to vector<128x94xf32>
      %c0_45 = arith.constant 0 : index
      %c0_46 = arith.constant 0 : index
      %72 = vector.load %arg12[%c0_45, %c0_46] : memref<128x1xf32, #tpu.memory_space<vmem>>, vector<128x1xf32>
      %c0_47 = arith.constant 0 : index
      %c0_48 = arith.constant 0 : index
      %73 = vector.load %arg13[%c0_47, %c0_48] : memref<128x1xf32, #tpu.memory_space<vmem>>, vector<128x1xf32>
      %74 = tpu.concatenate %59, %72, %73, %71 in 1 : vector<128x32xf32>, vector<128x1xf32>, vector<128x1xf32>, vector<128x94xf32> -> vector<128x128xf32>
      %c0_49 = arith.constant 0 : index
      %c0_50 = arith.constant 0 : index
      %75 = vector.load %arg9[%c0_49, %c0_50] : memref<128x128xf32, #tpu.memory_space<vmem>>, vector<128x128xf32>
      tpu.vector_store %arg9[%c0_49, %c0_50], %74 {strides = array<i32>} : memref<128x128xf32, #tpu.memory_space<vmem>>, vector<128x128xf32>,
      %76 = arith.truncf %70 : vector<128x16xf32> to vector<128x16xbf16>
      %c0_51 = arith.constant 0 : index
      %c0_52 = arith.constant 0 : index
      %77 = vector.load %arg10[%c0_51, %c0_52] : memref<128x16xbf16, #tpu.memory_space<vmem>>, vector<128x16xbf16>
      tpu.vector_store %arg10[%c0_51, %c0_52], %76 {strides = array<i32>} : memref<128x16xbf16, #tpu.memory_space<vmem>>, vector<128x16xbf16>,
    } else {
    }
    return
  }
  func.func @transform_0(%arg0: i32, %arg1: i32) -> (i32, i32) {
    %c0_i32 = arith.constant 0 : i32
    %c0_i32_0 = arith.constant 0 : i32
    return %arg0, %c0_i32 : i32, i32
  }
  func.func @transform_1(%arg0: i32, %arg1: i32) -> (i32, i32) {
    %c0_i32 = arith.constant 0 : i32
    %c0_i32_0 = arith.constant 0 : i32
    return %arg1, %c0_i32 : i32, i32
  }
  func.func @transform_2(%arg0: i32, %arg1: i32) -> (i32, i32) {
    %c0_i32 = arith.constant 0 : i32
    return %arg0, %arg1 : i32, i32
  }
  func.func @transform_3(%arg0: i32, %arg1: i32) -> (i32, i32) {
    %c0_i32 = arith.constant 0 : i32
    %c0_i32_0 = arith.constant 0 : i32
    %c0_i32_1 = arith.constant 0 : i32
    return %c0_i32, %c0_i32_0 : i32, i32
  }
  func.func @transform_4(%arg0: i32, %arg1: i32) -> (i32, i32) {
    %c0_i32 = arith.constant 0 : i32
    %c0_i32_0 = arith.constant 0 : i32
    %c0_i32_1 = arith.constant 0 : i32
    return %c0_i32, %c0_i32_0 : i32, i32
  }
  func.func @transform_5(%arg0: i32, %arg1: i32) -> (i32, i32) {
    %c0_i32 = arith.constant 0 : i32
    %c0_i32_0 = arith.constant 0 : i32
    %c0_i32_1 = arith.constant 0 : i32
    return %c0_i32, %c0_i32_0 : i32, i32
  }
  func.func @transform_6(%arg0: i32, %arg1: i32) -> (i32, i32) {
    %c0_i32 = arith.constant 0 : i32
    %c0_i32_0 = arith.constant 0 : i32
    %c0_i32_1 = arith.constant 0 : i32
    return %c0_i32, %c0_i32_0 : i32, i32
  }
  func.func @transform_7(%arg0: i32, %arg1: i32) -> (i32, i32) {
    %c0_i32 = arith.constant 0 : i32
    %c0_i32_0 = arith.constant 0 : i32
    return %arg0, %c0_i32 : i32, i32
  }
  func.func @transform_8(%arg0: i32, %arg1: i32) -> (i32, i32) {
    %c0_i32 = arith.constant 0 : i32
    %c0_i32_0 = arith.constant 0 : i32
    return %arg0, %c0_i32 : i32, i32
  }
}

</mosaic_0001>

<llo_original>
// kernel: tpu_custom_call.1
$region0: #{tpu_custom_call.1}
  #allocation0 [shape = 'u32[]', space=smem, size = 0x4, offset = 0x4, fixed_abs, tag = 'smem constant byte address 0x4 - core index']
  #allocation1 [shape = 'u32[144,128]{1,0:T(1,128)}', space=vmem, size = 0x12000, scoped, tag = 'internal scratch']
  #allocation2 [shape = 'f32[128,32]{1,0:T(8,128)}', space=vmem, size = 0x10000, scoped, tag = 'scratch operand']
  #allocation3 [shape = 'f32[128,1]{1,0:T(8,128)}', space=vmem, size = 0x10000, scoped, tag = 'scratch operand']
  #allocation4 [shape = 'f32[128,1]{1,0:T(8,128)}', space=vmem, size = 0x10000, scoped, tag = 'scratch operand']
  #allocation5 [shape = 'f32[128,32]{1,0:T(8,128)}', space=vmem, size = 0x10000, scoped, tag = 'scratch operand']
  %s0 = inlined_call_operand.vmem [shape: f32[256,32], index: 0, kind: input, shape index: {}]
  %s1 = inlined_call_operand.vmem [shape: f32[256,32], index: 1, kind: input, shape index: {}]
  %s2 = inlined_call_operand.vmem [shape: bf16[256,256], index: 2, kind: input, shape index: {}]
  %s3 = inlined_call_operand.vmem [shape: bf16[32,32], index: 3, kind: input, shape index: {}]
  %s4 = inlined_call_operand.vmem [shape: f32[1,32], index: 4, kind: input, shape index: {}]
  %s5 = inlined_call_operand.vmem [shape: f32[1,32], index: 5, kind: input, shape index: {}]
  %s6 = inlined_call_operand.vmem [shape: bf16[32,16], index: 6, kind: input, shape index: {}]
  %s7 = inlined_call_operand.hbm [shape: f32[256,128], index: 7, kind: output, shape index: {0}]
  %s8 = inlined_call_operand.vmem [shape: bf16[256,16], index: 8, kind: output, shape index: {1}]
  %9 = xla_tuple %s7, %s8
  %s10 = sld [smem:[#allocation0]]
  $region118: #{tpu_custom_call.1} parent=0
    _
  %s12 = ssub.s32 1, %s10
  %s13 = scalar_select 0, %s12, %s10
  $region1: #{tpu_custom_call.1} parent=0
    #allocation6 [shape = 'u8[65536]{0}', space=vmem, size = 0x10000, scoped, tag = 'input window, operand 2']
    #allocation7 [shape = 'u8[131072]{0}', space=vmem, size = 0x20000, scoped, tag = 'output window, operand 0']
    #allocation8 [shape = 's32[2]{0}', space=sflag, size = 0x8, scoped, tag = 'scoped memory for tpu_custom_call.1']
    %14 = vsyncpa [#allocation8], 0
    %s15 = scalar_lea.sflag [#allocation8], 1
    %16 = vsyncpa %s15, 0
    loop: start=0, step=1, limit=6
    $region2: #{tpu_custom_call.1} parent=1 // loop_pre_header
      _
    $region3: #{tpu_custom_call.1} parent=1 // loop_header
      %s18 = sphi 0, %s22
      %p19 = scmp.ge.s32.totalorder %s18, 6
      %s25 = sphi 0, %s37
      %s26 = sphi 0, %s33
      %s27 = sphi 0, %s25
      %s28 = sphi 0, %s26
      %s29 = sphi 0, %s27
      %s30 = sphi 0, %s28
      %s40 = sphi 0, %s42
      %s43 = sphi 0, %s40
      %s44 = sphi 0, %s43
      %s60 = sphi 0, %s44
      %s66 = sphi 0, %s68
      %s69 = sphi 0, %s66
      %s70 = sphi 0, %s69
      %s86 = sphi 0, %s70
      %s94 = sphi 0, %s96
      %s97 = sphi 0, %s94
      %s98 = sphi 0, %s97
      %s114 = sphi 0, %s98
      %s118 = sphi 0, %s118
      %s120 = sphi 0, %s118
      %s121 = sphi 0, %s120
      %s135 = sphi 0, %s121
      %s139 = sphi 0, %s139
      %s141 = sphi 0, %s139
      %s142 = sphi 0, %s141
      %s156 = sphi 0, %s142
      %s160 = sphi 0, %s160
      %s162 = sphi 0, %s160
      %s163 = sphi 0, %s162
      %s177 = sphi 0, %s163
      %s181 = sphi 0, %s181
      %s183 = sphi 0, %s181
      %s184 = sphi 0, %s183
      %s198 = sphi 0, %s184
      %s204 = sphi 0, %s206
      %s207 = sphi 0, %s204
      %s208 = sphi 0, %s207
      %s224 = sphi 0, %s208
      %s230 = sphi 0, %s232
      %s233 = sphi 0, %s230
      %s234 = sphi 0, %s233
      %s250 = sphi 0, %s234
    $region4: #{tpu_custom_call.1} parent=1 // loop_header_branch
      %21 = sbr.rel (%p19) target = $region8
    $region5: #{tpu_custom_call.1} parent=1 // loop_body
      %s23 = ssub.s32 %s18, 1
      %s24 = ssub.s32 %s18, 2
      %s31 = sadd.s32 1, %s26
      %p32 = scmp.ge.s32.totalorder %s31, 2
      %s33 = scalar_select %p32, 0, %s31
      %s34 = sadd.s32 1, %s25
      %s35 = scalar_select %p32, %s34, %s25
      %p36 = scmp.ge.s32.totalorder %s35, 2
      %s37 = scalar_select %p36, 0, %s35
      %s38 = ssub.s32 %s25, %s37
      %p39 = scmp.eq.s32.totalorder %s38, 0
      %s41 = sadd.s32 %s40, 1
      %s42 = scalar_select %p39, %s40, %s41
      %p45 = pneg %p39
      %p46 = scmp.eq.s32.totalorder %s18, 3
      %p47 = por %p45, %p46
      %p48 = scmp.ne.s32.totalorder %s40, %s43
      %p49 = scmp.eq.s32.totalorder %s18, 0
      %p50 = por %p48, %p49
      %p51 = scmp.ne.s32.totalorder %s40, %s43
      %p52 = scmp.eq.s32.totalorder %s23, 3
      %p53 = por %p51, %p52
      %p54 = scmp.ne.s32.totalorder %s43, %s44
      %p55 = scmp.eq.s32.totalorder %s23, 0
      %p56 = por %p54, %p55
      %p57 = scmp.ne.s32.totalorder %s43, %s44
      %p58 = scmp.eq.s32.totalorder %s24, 3
      %p59 = por %p57, %p58
      %p61 = scmp.ne.s32.totalorder %s44, %s60
      %p62 = scmp.eq.s32.totalorder %s24, 0
      %p63 = por %p61, %p62
      %s64 = ssub.s32 %s26, %s33
      %p65 = scmp.eq.s32.totalorder %s64, 0
      %s67 = sadd.s32 %s66, 1
      %s68 = scalar_select %p65, %s66, %s67
      %p71 = pneg %p65
      %p72 = scmp.eq.s32.totalorder %s18, 3
      %p73 = por %p71, %p72
      %p74 = scmp.ne.s32.totalorder %s66, %s69
      %p75 = scmp.eq.s32.totalorder %s18, 0
      %p76 = por %p74, %p75
      %p77 = scmp.ne.s32.totalorder %s66, %s69
      %p78 = scmp.eq.s32.totalorder %s23, 3
      %p79 = por %p77, %p78
      %p80 = scmp.ne.s32.totalorder %s69, %s70
      %p81 = scmp.eq.s32.totalorder %s23, 0
      %p82 = por %p80, %p81
      %p83 = scmp.ne.s32.totalorder %s69, %s70
      %p84 = scmp.eq.s32.totalorder %s24, 3
      %p85 = por %p83, %p84
      %p87 = scmp.ne.s32.totalorder %s70, %s86
      %p88 = scmp.eq.s32.totalorder %s24, 0
      %p89 = por %p87, %p88
      %s90 = ssub.s32 %s25, %s37
      %s91 = ssub.s32 %s26, %s33
      %s92 = sor.u32 %s90, %s91
      %p93 = scmp.eq.s32.totalorder %s92, 0
      %s95 = sadd.s32 %s94, 1
      %s96 = scalar_select %p93, %s94, %s95
      %p99 = pneg %p93
      %p100 = scmp.eq.s32.totalorder %s18, 3
      %p101 = por %p99, %p100
      %p102 = scmp.ne.s32.totalorder %s94, %s97
      %p103 = scmp.eq.s32.totalorder %s18, 0
      %p104 = por %p102, %p103
      %p105 = scmp.ne.s32.totalorder %s94, %s97
      %p106 = scmp.eq.s32.totalorder %s23, 3
      %p107 = por %p105, %p106
      %p108 = scmp.ne.s32.totalorder %s97, %s98
      %p109 = scmp.eq.s32.totalorder %s23, 0
      %p110 = por %p108, %p109
      %p111 = scmp.ne.s32.totalorder %s97, %s98
      %p112 = scmp.eq.s32.totalorder %s24, 3
      %p113 = por %p111, %p112
      %p115 = scmp.ne.s32.totalorder %s98, %s114
      %p116 = scmp.eq.s32.totalorder %s24, 0
      %p117 = por %p115, %p116
      %s119 = sadd.s32 %s118, 1
      %p122 = scmp.eq.s32.totalorder %s18, 3
      %p123 = scmp.ne.s32.totalorder %s118, %s120
      %p124 = scmp.eq.s32.totalorder %s18, 0
      %p125 = por %p123, %p124
      %p126 = scmp.ne.s32.totalorder %s118, %s120
      %p127 = scmp.eq.s32.totalorder %s23, 3
      %p128 = por %p126, %p127
      %p129 = scmp.ne.s32.totalorder %s120, %s121
      %p130 = scmp.eq.s32.totalorder %s23, 0
      %p131 = por %p129, %p130
      %p132 = scmp.ne.s32.totalorder %s120, %s121
      %p133 = scmp.eq.s32.totalorder %s24, 3
      %p134 = por %p132, %p133
      %p136 = scmp.ne.s32.totalorder %s121, %s135
      %p137 = scmp.eq.s32.totalorder %s24, 0
      %p138 = por %p136, %p137
      %s140 = sadd.s32 %s139, 1
      %p143 = scmp.eq.s32.totalorder %s18, 3
      %p144 = scmp.ne.s32.totalorder %s139, %s141
      %p145 = scmp.eq.s32.totalorder %s18, 0
      %p146 = por %p144, %p145
      %p147 = scmp.ne.s32.totalorder %s139, %s141
      %p148 = scmp.eq.s32.totalorder %s23, 3
      %p149 = por %p147, %p148
      %p150 = scmp.ne.s32.totalorder %s141, %s142
      %p151 = scmp.eq.s32.totalorder %s23, 0
      %p152 = por %p150, %p151
      %p153 = scmp.ne.s32.totalorder %s141, %s142
      %p154 = scmp.eq.s32.totalorder %s24, 3
      %p155 = por %p153, %p154
      %p157 = scmp.ne.s32.totalorder %s142, %s156
      %p158 = scmp.eq.s32.totalorder %s24, 0
      %p159 = por %p157, %p158
      %s161 = sadd.s32 %s160, 1
      %p164 = scmp.eq.s32.totalorder %s18, 3
      %p165 = scmp.ne.s32.totalorder %s160, %s162
      %p166 = scmp.eq.s32.totalorder %s18, 0
      %p167 = por %p165, %p166
      %p168 = scmp.ne.s32.totalorder %s160, %s162
      %p169 = scmp.eq.s32.totalorder %s23, 3
      %p170 = por %p168, %p169
      %p171 = scmp.ne.s32.totalorder %s162, %s163
      %p172 = scmp.eq.s32.totalorder %s23, 0
      %p173 = por %p171, %p172
      %p174 = scmp.ne.s32.totalorder %s162, %s163
      %p175 = scmp.eq.s32.totalorder %s24, 3
      %p176 = por %p174, %p175
      %p178 = scmp.ne.s32.totalorder %s163, %s177
      %p179 = scmp.eq.s32.totalorder %s24, 0
      %p180 = por %p178, %p179
      %s182 = sadd.s32 %s181, 1
      %p185 = scmp.eq.s32.totalorder %s18, 3
      %p186 = scmp.ne.s32.totalorder %s181, %s183
      %p187 = scmp.eq.s32.totalorder %s18, 0
      %p188 = por %p186, %p187
      %p189 = scmp.ne.s32.totalorder %s181, %s183
      %p190 = scmp.eq.s32.totalorder %s23, 3
      %p191 = por %p189, %p190
      %p192 = scmp.ne.s32.totalorder %s183, %s184
      %p193 = scmp.eq.s32.totalorder %s23, 0
      %p194 = por %p192, %p193
      %p195 = scmp.ne.s32.totalorder %s183, %s184
      %p196 = scmp.eq.s32.totalorder %s24, 3
      %p197 = por %p195, %p196
      %p199 = scmp.ne.s32.totalorder %s184, %s198
      %p200 = scmp.eq.s32.totalorder %s24, 0
      %p201 = por %p199, %p200
      %s202 = ssub.s32 %s25, %s37
      %p203 = scmp.eq.s32.totalorder %s202, 0
      %s205 = sadd.s32 %s204, 1
      %s206 = scalar_select %p203, %s204, %s205
      %p209 = pneg %p203
      %p210 = scmp.eq.s32.totalorder %s18, 3
      %p211 = por %p209, %p210
      %p212 = scmp.ne.s32.totalorder %s204, %s207
      %p213 = scmp.eq.s32.totalorder %s18, 0
      %p214 = por %p212, %p213
      %p215 = scmp.ne.s32.totalorder %s204, %s207
      %p216 = scmp.eq.s32.totalorder %s23, 3
      %p217 = por %p215, %p216
      %p218 = scmp.ne.s32.totalorder %s207, %s208
      %p219 = scmp.eq.s32.totalorder %s23, 0
      %p220 = por %p218, %p219
      %p221 = scmp.ne.s32.totalorder %s207, %s208
      %p222 = scmp.eq.s32.totalorder %s24, 3
      %p223 = por %p221, %p222
      %p225 = scmp.ne.s32.totalorder %s208, %s224
      %p226 = scmp.eq.s32.totalorder %s24, 0
      %p227 = por %p225, %p226
      %s228 = ssub.s32 %s25, %s37
      %p229 = scmp.eq.s32.totalorder %s228, 0
      %s231 = sadd.s32 %s230, 1
      %s232 = scalar_select %p229, %s230, %s231
      %p235 = pneg %p229
      %p236 = scmp.eq.s32.totalorder %s18, 3
      %p237 = por %p235, %p236
      %p238 = scmp.ne.s32.totalorder %s230, %s233
      %p239 = scmp.eq.s32.totalorder %s18, 0
      %p240 = por %p238, %p239
      %p241 = scmp.ne.s32.totalorder %s230, %s233
      %p242 = scmp.eq.s32.totalorder %s23, 3
      %p243 = por %p241, %p242
      %p244 = scmp.ne.s32.totalorder %s233, %s234
      %p245 = scmp.eq.s32.totalorder %s23, 0
      %p246 = por %p244, %p245
      %p247 = scmp.ne.s32.totalorder %s233, %s234
      %p248 = scmp.eq.s32.totalorder %s24, 3
      %p249 = por %p247, %p248
      %p251 = scmp.ne.s32.totalorder %s234, %s250
      %p252 = scmp.eq.s32.totalorder %s24, 0
      %p253 = por %p251, %p252
      %p254 = scmp.le.s32.totalorder 1, %s18
      %p255 = scmp.lt.s32.totalorder %s18, 5
      %p256 = pnand %p254, %p255
      %p257 = pneg %p256
      // Predicated region
      $region9: #{tpu_custom_call.1} parent=5 // pred_check
        _
      $region10: #{tpu_custom_call.1} parent=5 // pred_check_branch
        %259 = sbr.rel (%p256) target = $region12
      $region11: #{tpu_custom_call.1} parent=5 // pred_region
        %s260 = ssub.s32 %s18, 1
        // Predicated region
        $region13: #{tpu_custom_call.1} parent=11 // pred_check
          %p261 = pneg %p131
        $region14: #{tpu_custom_call.1} parent=11 // pred_check_branch
          %263 = sbr.rel (%p261) target = $region16
        $region15: #{tpu_custom_call.1} parent=11 // pred_region
          _
        $region16: #{tpu_custom_call.1} parent=11 // pred_fallthru
          _
        // Predicated region
        $region17: #{tpu_custom_call.1} parent=11 // pred_check
          %p264 = pneg %p152
        $region18: #{tpu_custom_call.1} parent=11 // pred_check_branch
          %266 = sbr.rel (%p264) target = $region20
        $region19: #{tpu_custom_call.1} parent=11 // pred_region
          _
        $region20: #{tpu_custom_call.1} parent=11 // pred_fallthru
          _
        // Predicated region
        $region21: #{tpu_custom_call.1} parent=11 // pred_check
          %p267 = pneg %p173
        $region22: #{tpu_custom_call.1} parent=11 // pred_check_branch
          %269 = sbr.rel (%p267) target = $region24
        $region23: #{tpu_custom_call.1} parent=11 // pred_region
          _
        $region24: #{tpu_custom_call.1} parent=11 // pred_fallthru
          _
        // Predicated region
        $region25: #{tpu_custom_call.1} parent=11 // pred_check
          %p270 = pneg %p194
        $region26: #{tpu_custom_call.1} parent=11 // pred_check_branch
          %272 = sbr.rel (%p270) target = $region28
        $region27: #{tpu_custom_call.1} parent=11 // pred_region
          _
        $region28: #{tpu_custom_call.1} parent=11 // pred_fallthru
          _
      $region12: #{tpu_custom_call.1} parent=5 // pred_fallthru
        _
      %p273 = scmp.lt.s32.totalorder %s18, 4
      // Predicated region
      $region29: #{tpu_custom_call.1} parent=5 // pred_check
        %p274 = pneg %p273
      $region30: #{tpu_custom_call.1} parent=5 // pred_check_branch
        %276 = sbr.rel (%p274) target = $region32
      $region31: #{tpu_custom_call.1} parent=5 // pred_region
        // Predicated region
        $region33: #{tpu_custom_call.1} parent=31 // pred_check
          %p277 = pneg %p50
        $region34: #{tpu_custom_call.1} parent=31 // pred_check_branch
          %279 = sbr.rel (%p277) target = $region36
        $region35: #{tpu_custom_call.1} parent=31 // pred_region
          %s280 = smul.u32 16, %s25
          %p281 = scmp.lt.s32.totalorder %s280, 31
          %s282 = scalar_select %p281, %s280, 31
          %s283 = smul.addr %s282, 8
          %s284 = scalar_lea.vmem %s0, %s283
          %s285 = smul.u32 16, %s25
        $region36: #{tpu_custom_call.1} parent=31 // pred_fallthru
          _
        // Predicated region
        $region37: #{tpu_custom_call.1} parent=31 // pred_check
          %p286 = pneg %p76
        $region38: #{tpu_custom_call.1} parent=31 // pred_check_branch
          %288 = sbr.rel (%p286) target = $region40
        $region39: #{tpu_custom_call.1} parent=31 // pred_region
          %s289 = smul.u32 16, %s26
          %p290 = scmp.lt.s32.totalorder %s289, 31
          %s291 = scalar_select %p290, %s289, 31
          %s292 = smul.addr %s291, 8
          %s293 = scalar_lea.vmem %s1, %s292
          %s294 = smul.u32 16, %s26
        $region40: #{tpu_custom_call.1} parent=31 // pred_fallthru
          _
        // Predicated region
        $region41: #{tpu_custom_call.1} parent=31 // pred_check
          %p295 = pneg %p104
        $region42: #{tpu_custom_call.1} parent=31 // pred_check_branch
          %297 = sbr.rel (%p295) target = $region44
        $region43: #{tpu_custom_call.1} parent=31 // pred_region
          %s298 = sand.u32 %s94, 1
          %s299 = sand.u32 %s94, 1
          %s300 = smul.addr %s299, 64
          %s301 = scalar_lea.vmem [#allocation6], %s300
          %s302 = smul.u32 16, %s25
          %s303 = smul.addr %s302, 2
          %s304 = sadd.s32 %s26, %s303
          %s305 = smul.addr %s304, 4
          %s306 = scalar_lea.vmem %s2, %s305
          // Predicated region
          $region45: #{tpu_custom_call.1} parent=43 // pred_check
            _
          $region46: #{tpu_custom_call.1} parent=43 // pred_check_branch
            %308 = sbr.rel (0) target = $region48
          $region47: #{tpu_custom_call.1} parent=43 // pred_region
            // Predicated region
            $region49: #{tpu_custom_call.1} parent=47 // pred_check
              _
            $region50: #{tpu_custom_call.1} parent=47 // pred_check_branch
              %310 = sbr.rel target = $region52
            $region51: #{tpu_custom_call.1} parent=47 // pred_region
              // Predicated region
              $region64: #{tpu_custom_call.1} parent=51 // pred_check
                _
              $region65: #{tpu_custom_call.1} parent=51 // pred_check_branch
                %355 = sbr.rel (0) target = $region67
              $region66: #{tpu_custom_call.1} parent=51 // pred_region
                loop: start=0, step=1, limit=1
                $region68: #{tpu_custom_call.1} parent=66 // loop_pre_header
                  _
                $region69: #{tpu_custom_call.1} parent=66 // loop_header
                  %s357 = sphi 0, %s361
                  %p358 = scmp.ge.s32.totalorder %s357, 1
                  %s362 = sphi %s306, %s306
                  %s363 = sphi %s301, %s301
                $region70: #{tpu_custom_call.1} parent=66 // loop_header_branch
                  %360 = sbr.rel (%p358) target = $region74
                $region71: #{tpu_custom_call.1} parent=66 // loop_body
                  _
                $region72: #{tpu_custom_call.1} parent=66 // loop_footer
                  %s361 = sadd.s32 1, %s357
                $region73: #{tpu_custom_call.1} parent=66 // loop_footer_branch
                  %356 = sbr.rel target = $region69
                $region74: #{tpu_custom_call.1} parent=66 // loop_exit
                  _
                loop: start=0, step=1, limit=1
                $region75: #{tpu_custom_call.1} parent=66 // loop_pre_header
                  _
                $region76: #{tpu_custom_call.1} parent=66 // loop_header
                  %s366 = sphi 0, %s370
                  %p367 = scmp.ge.s32.totalorder %s366, 1
                  %s371 = sphi %s306, %s306
                  %s372 = sphi %s301, %s301
                $region77: #{tpu_custom_call.1} parent=66 // loop_header_branch
                  %369 = sbr.rel (%p367) target = $region81
                $region78: #{tpu_custom_call.1} parent=66 // loop_body
                  %v373 = vld [vmem:[%s371] sm:$0xf]
                  %374 = vst [vmem:[%s372] sm:$0xf] %v373
                  %v375 = vld [vmem:[%s371 + $0x8] sm:$0xf]
                  %376 = vst [vmem:[%s372 + $0x4] sm:$0xf] %v375
                  %v377 = vld [vmem:[%s371 + $0x10] sm:$0xf]
                  %378 = vst [vmem:[%s372 + $0x8] sm:$0xf] %v377
                  %v379 = vld [vmem:[%s371 + $0x18] sm:$0xf]
                  %380 = vst [vmem:[%s372 + $0xc] sm:$0xf] %v379
                  %v381 = vld [vmem:[%s371 + $0x20] sm:$0xf]
                  %382 = vst [vmem:[%s372 + $0x10] sm:$0xf] %v381
                  %v383 = vld [vmem:[%s371 + $0x28] sm:$0xf]
                  %384 = vst [vmem:[%s372 + $0x14] sm:$0xf] %v383
                  %v385 = vld [vmem:[%s371 + $0x30] sm:$0xf]
                  %386 = vst [vmem:[%s372 + $0x18] sm:$0xf] %v385
                  %v387 = vld [vmem:[%s371 + $0x38] sm:$0xf]
                  %388 = vst [vmem:[%s372 + $0x1c] sm:$0xf] %v387
                  %v389 = vld [vmem:[%s371 + $0x40] sm:$0xf]
                  %390 = vst [vmem:[%s372 + $0x20] sm:$0xf] %v389
                  %v391 = vld [vmem:[%s371 + $0x48] sm:$0xf]
                  %392 = vst [vmem:[%s372 + $0x24] sm:$0xf] %v391
                  %v393 = vld [vmem:[%s371 + $0x50] sm:$0xf]
                  %394 = vst [vmem:[%s372 + $0x28] sm:$0xf] %v393
                  %v395 = vld [vmem:[%s371 + $0x58] sm:$0xf]
                  %396 = vst [vmem:[%s372 + $0x2c] sm:$0xf] %v395
                  %v397 = vld [vmem:[%s371 + $0x60] sm:$0xf]
                  %398 = vst [vmem:[%s372 + $0x30] sm:$0xf] %v397
                  %v399 = vld [vmem:[%s371 + $0x68] sm:$0xf]
                  %400 = vst [vmem:[%s372 + $0x34] sm:$0xf] %v399
                  %v401 = vld [vmem:[%s371 + $0x70] sm:$0xf]
                  %402 = vst [vmem:[%s372 + $0x38] sm:$0xf] %v401
                  %v403 = vld [vmem:[%s371 + $0x78] sm:$0xf]
                  %404 = vst [vmem:[%s372 + $0x3c] sm:$0xf] %v403
                $region79: #{tpu_custom_call.1} parent=66 // loop_footer
                  %s370 = sadd.s32 1, %s366
                $region80: #{tpu_custom_call.1} parent=66 // loop_footer_branch
                  %365 = sbr.rel target = $region76
                $region81: #{tpu_custom_call.1} parent=66 // loop_exit
                  _
              $region67: #{tpu_custom_call.1} parent=51 // pred_fallthru
                _
            $region52: #{tpu_custom_call.1} parent=47 // pred_fallthru
              _
            // Predicated region
            $region53: #{tpu_custom_call.1} parent=47 // pred_check
              _
            $region54: #{tpu_custom_call.1} parent=47 // pred_check_branch
              %312 = sbr.rel (0) target = $region56
            $region55: #{tpu_custom_call.1} parent=47 // pred_region
              loop: start=0, step=1, limit=1
              $region57: #{tpu_custom_call.1} parent=55 // loop_pre_header
                _
              $region58: #{tpu_custom_call.1} parent=55 // loop_header
                %s315 = sphi 0, %s319
                %p316 = scmp.ge.s32.totalorder %s315, 1
                %s320 = sphi %s306, %s306
                %s321 = sphi %s301, %s301
              $region59: #{tpu_custom_call.1} parent=55 // loop_header_branch
                %318 = sbr.rel (%p316) target = $region63
              $region60: #{tpu_custom_call.1} parent=55 // loop_body
                %v322 = vld [vmem:[%s320] sm:$0xf]
                %323 = vst [vmem:[%s321] sm:$0xf] %v322
                %v324 = vld [vmem:[%s320 + $0x8] sm:$0xf]
                %325 = vst [vmem:[%s321 + $0x4] sm:$0xf] %v324
                %v326 = vld [vmem:[%s320 + $0x10] sm:$0xf]
                %327 = vst [vmem:[%s321 + $0x8] sm:$0xf] %v326
                %v328 = vld [vmem:[%s320 + $0x18] sm:$0xf]
                %329 = vst [vmem:[%s321 + $0xc] sm:$0xf] %v328
                %v330 = vld [vmem:[%s320 + $0x20] sm:$0xf]
                %331 = vst [vmem:[%s321 + $0x10] sm:$0xf] %v330
                %v332 = vld [vmem:[%s320 + $0x28] sm:$0xf]
                %333 = vst [vmem:[%s321 + $0x14] sm:$0xf] %v332
                %v334 = vld [vmem:[%s320 + $0x30] sm:$0xf]
                %335 = vst [vmem:[%s321 + $0x18] sm:$0xf] %v334
                %v336 = vld [vmem:[%s320 + $0x38] sm:$0xf]
                %337 = vst [vmem:[%s321 + $0x1c] sm:$0xf] %v336
                %v338 = vld [vmem:[%s320 + $0x40] sm:$0xf]
                %339 = vst [vmem:[%s321 + $0x20] sm:$0xf] %v338
                %v340 = vld [vmem:[%s320 + $0x48] sm:$0xf]
                %341 = vst [vmem:[%s321 + $0x24] sm:$0xf] %v340
                %v342 = vld [vmem:[%s320 + $0x50] sm:$0xf]
                %343 = vst [vmem:[%s321 + $0x28] sm:$0xf] %v342
                %v344 = vld [vmem:[%s320 + $0x58] sm:$0xf]
                %345 = vst [vmem:[%s321 + $0x2c] sm:$0xf] %v344
                %v346 = vld [vmem:[%s320 + $0x60] sm:$0xf]
                %347 = vst [vmem:[%s321 + $0x30] sm:$0xf] %v346
                %v348 = vld [vmem:[%s320 + $0x68] sm:$0xf]
                %349 = vst [vmem:[%s321 + $0x34] sm:$0xf] %v348
                %v350 = vld [vmem:[%s320 + $0x70] sm:$0xf]
                %351 = vst [vmem:[%s321 + $0x38] sm:$0xf] %v350
                %v352 = vld [vmem:[%s320 + $0x78] sm:$0xf]
                %353 = vst [vmem:[%s321 + $0x3c] sm:$0xf] %v352
              $region61: #{tpu_custom_call.1} parent=55 // loop_footer
                %s319 = sadd.s32 1, %s315
              $region62: #{tpu_custom_call.1} parent=55 // loop_footer_branch
                %314 = sbr.rel target = $region58
              $region63: #{tpu_custom_call.1} parent=55 // loop_exit
                _
            $region56: #{tpu_custom_call.1} parent=47 // pred_fallthru
              _
          $region48: #{tpu_custom_call.1} parent=43 // pred_fallthru
            _
          %405 = vnop
        $region44: #{tpu_custom_call.1} parent=31 // pred_fallthru
          _
      $region32: #{tpu_custom_call.1} parent=5 // pred_fallthru
        _
      %p406 = scmp.le.s32.totalorder 1, %s18
      %p407 = scmp.lt.s32.totalorder %s18, 5
      %p408 = pnand %p406, %p407
      %p409 = pneg %p408
      // Predicated region
      $region82: #{tpu_custom_call.1} parent=5 // pred_check
        _
      $region83: #{tpu_custom_call.1} parent=5 // pred_check_branch
        %411 = sbr.rel (%p408) target = $region85
      $region84: #{tpu_custom_call.1} parent=5 // pred_region
        %s412 = ssub.s32 %s18, 1
        %s413 = sand.u32 %s97, 1
        %s414 = sand.u32 %s97, 1
        %s415 = smul.addr %s414, 64
        %s416 = scalar_lea.vmem [#allocation6], %s415
        // Predicated region
        $region86: #{tpu_custom_call.1} parent=84 // pred_check
          %p417 = pneg %p110
        $region87: #{tpu_custom_call.1} parent=84 // pred_check_branch
          %419 = sbr.rel (%p417) target = $region89
        $region88: #{tpu_custom_call.1} parent=84 // pred_region
          _
        $region89: #{tpu_custom_call.1} parent=84 // pred_fallthru
          _
        %s420 = smul.u32 16, %s27
        %p421 = scmp.lt.s32.totalorder %s420, 31
        %s422 = scalar_select %p421, %s420, 31
        %s423 = smul.addr %s422, 8
        %s424 = scalar_lea.vmem %s0, %s423
        %p425 = pneg %p56
        %p426 = pneg %p53
        %s427 = smul.u32 16, %s28
        %p428 = scmp.lt.s32.totalorder %s427, 31
        %s429 = scalar_select %p428, %s427, 31
        %s430 = smul.addr %s429, 8
        %s431 = scalar_lea.vmem %s1, %s430
        %p432 = pneg %p82
        %p433 = pneg %p79
        %s434 = sand.u32 %s97, 1
        %s435 = sand.u32 %s97, 1
        %s436 = smul.addr %s435, 64
        %s437 = scalar_lea.vmem [#allocation6], %s436
        %p438 = pneg %p110
        %p439 = pneg %p107
        %p440 = pneg %p131
        %p441 = pneg %p128
        %p442 = pneg %p152
        %p443 = pneg %p149
        %p444 = pneg %p173
        %p445 = pneg %p170
        %p446 = pneg %p194
        %p447 = pneg %p191
        %p448 = pneg %p220
        %p449 = pneg %p217
        %s450 = sand.u32 %s207, 1
        %s451 = scalar_lea.sflag [#allocation8], %s450
        %s452 = sand.u32 %s207, 1
        %s453 = smul.addr %s452, 128
        %s454 = scalar_lea.vmem [#allocation7], %s453
        %p455 = pneg %p246
        %p456 = pneg %p243
        %s457 = smul.u32 16, %s27
        %p458 = scmp.lt.s32.totalorder %s457, 31
        %s459 = scalar_select %p458, %s457, 31
        %s460 = smul.addr %s459, 4
        %s461 = scalar_lea.vmem %s8, %s460
        %s462 = smul.u32 16, %s27
        %p463 = scmp.lt.s32.totalorder %s462, 31
        %s464 = scalar_select %p463, %s462, 31
        %s465 = smul.addr %s464, 8
        %s466 = scalar_lea.vmem %s0, %s465
        %s467 = smul.u32 16, %s27
        %s468 = smul.u32 16, %s28
        %p469 = scmp.lt.s32.totalorder %s468, 31
        %s470 = scalar_select %p469, %s468, 31
        %s471 = smul.addr %s470, 8
        %s472 = scalar_lea.vmem %s1, %s471
        %s473 = smul.u32 16, %s28
        %s474 = smul.u32 16, %s27
        %s475 = smul.u32 16, %s27
        %s476 = smul.u32 16, %s27
        %p477 = scmp.lt.s32.totalorder %s476, 31
        %s478 = scalar_select %p477, %s476, 31
        %s479 = smul.addr %s478, 4
        %s480 = scalar_lea.vmem %s8, %s479
        %s481 = smul.u32 16, %s27
        %p485 = scmp.eq.s32.totalorder %s28, 0
        // Predicated region
        $region90: #{tpu_custom_call.1} parent=84 // pred_check
          %p486 = pneg %p485
        $region91: #{tpu_custom_call.1} parent=84 // pred_check_branch
          %488 = sbr.rel (%p486) target = $region93
        $region92: #{tpu_custom_call.1} parent=84 // pred_region
          %v489 = vld [vmem:[%s466] sm:$0xff]
          %v490 = vld [vmem:[%s466 + $0x8] sm:$0xff]
          %v491 = vld [vmem:[%s466 + $0x10] sm:$0xff]
          %v492 = vld [vmem:[%s466 + $0x18] sm:$0xff]
          %v493 = vld [vmem:[%s466 + $0x20] sm:$0xff]
          %v494 = vld [vmem:[%s466 + $0x28] sm:$0xff]
          %v495 = vld [vmem:[%s466 + $0x30] sm:$0xff]
          %v496 = vld [vmem:[%s466 + $0x38] sm:$0xff]
          %v497 = vld [vmem:[%s466 + $0x40] sm:$0xff]
          %v498 = vld [vmem:[%s466 + $0x48] sm:$0xff]
          %v499 = vld [vmem:[%s466 + $0x50] sm:$0xff]
          %v500 = vld [vmem:[%s466 + $0x58] sm:$0xff]
          %v501 = vld [vmem:[%s466 + $0x60] sm:$0xff]
          %v502 = vld [vmem:[%s466 + $0x68] sm:$0xff]
          %v503 = vld [vmem:[%s466 + $0x70] sm:$0xff]
          %v504 = vld [vmem:[%s466 + $0x78] sm:$0xff]
          %v505 = vpack.c.bf16 %v490, %v489
          %v506 = vpack.c.bf16 %v492, %v491
          %v507 = vpack.c.bf16 %v494, %v493
          %v508 = vpack.c.bf16 %v496, %v495
          %v509 = vpack.c.bf16 %v498, %v497
          %v510 = vpack.c.bf16 %v500, %v499
          %v511 = vpack.c.bf16 %v502, %v501
          %v512 = vpack.c.bf16 %v504, %v503
          %v513 = vld [vmem:[%s3] sm:$0xf]
          %v514 = vld [vmem:[%s3 + $0x4] sm:$0xf]
          %v515 = vld [vmem:[%s3 + $0x8] sm:$0xf]
          %v516 = vld [vmem:[%s3 + $0xc] sm:$0xf]
          %v521 = vunpack.c.l.b16 %v513
          %v522 = vunpack.c.l.b16 %v514
          %v523 = vunpack.c.l.b16 %v515
          %v524 = vunpack.c.l.b16 %v516
          %v525 = vpack.c.b16 %v522, %v521
          %v526 = vpack.c.b16 %v524, %v523
          %vm529 = vcmask 261120
          %v531 = vsel %vm529, %v505, 0
          %v534 = vsel %vm529, %v506, 0
          %v537 = vsel %vm529, %v507, 0
          %v540 = vsel %vm529, %v508, 0
          %v543 = vsel %vm529, %v509, 0
          %v546 = vsel %vm529, %v510, 0
          %v549 = vsel %vm529, %v511, 0
          %v552 = vsel %vm529, %v512, 0
          %554 = vmatprep.subr.bf16.mxu0 0
          %555 = vmatpush1.bf16.msra.mxu0 %v525
          %556 = vmatprep.subr.bf16.mxu0 0
          %557 = vmatpush1.bf16.msra.mxu0 %v526
          %558 = vmatprep.subr.bf16.mxu0 0
          %559 = vmatpush1.bf16.msra.mxu0 0
          %560 = vmatprep.subr.bf16.mxu0 0
          %561 = vmatpush1.bf16.msra.mxu0 0
          %562 = vmatprep.subr.bf16.mxu0 0
          %563 = vmatpush1.bf16.msra.mxu0 0
          %564 = vmatprep.subr.bf16.mxu0 0
          %565 = vmatpush1.bf16.msra.mxu0 0
          %566 = vmatprep.subr.bf16.mxu0 0
          %567 = vmatpush1.bf16.msra.mxu0 0
          %568 = vmatprep.subr.bf16.mxu0 0
          %569 = vmatpush1.bf16.msra.mxu0 0
          %570 = vmatprep.subr.bf16.mxu0 0
          %571 = vmatpush1.bf16.msra.mxu0 0
          %572 = vmatprep.subr.bf16.mxu0 0
          %573 = vmatpush1.bf16.msra.mxu0 0
          %574 = vmatprep.subr.bf16.mxu0 0
          %575 = vmatpush1.bf16.msra.mxu0 0
          %576 = vmatprep.subr.bf16.mxu0 0
          %577 = vmatpush1.bf16.msra.mxu0 0
          %578 = vmatprep.subr.bf16.mxu0 0
          %579 = vmatpush1.bf16.msra.mxu0 0
          %580 = vmatprep.subr.bf16.mxu0 0
          %581 = vmatpush1.bf16.msra.mxu0 0
          %582 = vmatprep.subr.bf16.mxu0 0
          %583 = vmatpush1.bf16.msra.mxu0 0
          %584 = vmatprep.subr.bf16.mxu0 0
          %585 = vmatpush1.bf16.msra.mxu0 0
          %586 = vmatprep.mubr.bf16.mxu0 0
          %587 = vmatmul.mubr.bf16.gmra.mrb[0].mxu0 %v531
          %v588 = vpop.f32.mrb[0].mxu0
          %v589 = vadd.f32 0.0, %v588
          %v590 = vpop.f32.mrb[0].mxu0
          %v591 = vpop.f32.mrb[0].mxu0
          %v592 = vadd.f32 0.0, %v591
          %v593 = vpop.f32.mrb[0].mxu0
          %594 = vmatprep.mubr.bf16.mxu0 0
          %595 = vmatmul.mubr.bf16.gmra.mrb[0].mxu0 %v534
          %v596 = vpop.f32.mrb[0].mxu0
          %v597 = vadd.f32 0.0, %v596
          %v598 = vpop.f32.mrb[0].mxu0
          %v599 = vpop.f32.mrb[0].mxu0
          %v600 = vadd.f32 0.0, %v599
          %v601 = vpop.f32.mrb[0].mxu0
          %602 = vmatprep.mubr.bf16.mxu0 0
          %603 = vmatmul.mubr.bf16.gmra.mrb[0].mxu0 %v537
          %v604 = vpop.f32.mrb[0].mxu0
          %v605 = vadd.f32 0.0, %v604
          %v606 = vpop.f32.mrb[0].mxu0
          %v607 = vpop.f32.mrb[0].mxu0
          %v608 = vadd.f32 0.0, %v607
          %v609 = vpop.f32.mrb[0].mxu0
          %610 = vmatprep.mubr.bf16.mxu0 0
          %611 = vmatmul.mubr.bf16.gmra.mrb[0].mxu0 %v540
          %v612 = vpop.f32.mrb[0].mxu0
          %v613 = vadd.f32 0.0, %v612
          %v614 = vpop.f32.mrb[0].mxu0
          %v615 = vpop.f32.mrb[0].mxu0
          %v616 = vadd.f32 0.0, %v615
          %v617 = vpop.f32.mrb[0].mxu0
          %618 = vmatprep.mubr.bf16.mxu0 0
          %619 = vmatmul.mubr.bf16.gmra.mrb[0].mxu0 %v543
          %v620 = vpop.f32.mrb[0].mxu0
          %v621 = vadd.f32 0.0, %v620
          %v622 = vpop.f32.mrb[0].mxu0
          %v623 = vpop.f32.mrb[0].mxu0
          %v624 = vadd.f32 0.0, %v623
          %v625 = vpop.f32.mrb[0].mxu0
          %626 = vmatprep.mubr.bf16.mxu0 0
          %627 = vmatmul.mubr.bf16.gmra.mrb[0].mxu0 %v546
          %v628 = vpop.f32.mrb[0].mxu0
          %v629 = vadd.f32 0.0, %v628
          %v630 = vpop.f32.mrb[0].mxu0
          %v631 = vpop.f32.mrb[0].mxu0
          %v632 = vadd.f32 0.0, %v631
          %v633 = vpop.f32.mrb[0].mxu0
          %634 = vmatprep.mubr.bf16.mxu0 0
          %635 = vmatmul.mubr.bf16.gmra.mrb[0].mxu0 %v549
          %v636 = vpop.f32.mrb[0].mxu0
          %v637 = vadd.f32 0.0, %v636
          %v638 = vpop.f32.mrb[0].mxu0
          %v639 = vpop.f32.mrb[0].mxu0
          %v640 = vadd.f32 0.0, %v639
          %v641 = vpop.f32.mrb[0].mxu0
          %642 = vmatprep.mubr.bf16.mxu0 0
          %643 = vmatmul.mubr.bf16.gmra.mrb[0].mxu0 %v552
          %v644 = vpop.f32.mrb[0].mxu0
          %v645 = vadd.f32 0.0, %v644
          %v646 = vpop.f32.mrb[0].mxu0
          %v647 = vpop.f32.mrb[0].mxu0
          %v648 = vadd.f32 0.0, %v647
          %v649 = vpop.f32.mrb[0].mxu0
          %650 = vdwg.mxu0
          %651 = vst.msk [vmem:[#allocation2] sm:$0xff] %vm529, %v589
          %652 = vst.msk [vmem:[#allocation2 + $0x8] sm:$0xff] %vm529, %v592
          %653 = vst.msk [vmem:[#allocation2 + $0x10] sm:$0xff] %vm529, %v597
          %654 = vst.msk [vmem:[#allocation2 + $0x18] sm:$0xff] %vm529, %v600
          %655 = vst.msk [vmem:[#allocation2 + $0x20] sm:$0xff] %vm529, %v605
          %656 = vst.msk [vmem:[#allocation2 + $0x28] sm:$0xff] %vm529, %v608
          %657 = vst.msk [vmem:[#allocation2 + $0x30] sm:$0xff] %vm529, %v613
          %658 = vst.msk [vmem:[#allocation2 + $0x38] sm:$0xff] %vm529, %v616
          %659 = vst.msk [vmem:[#allocation2 + $0x40] sm:$0xff] %vm529, %v621
          %660 = vst.msk [vmem:[#allocation2 + $0x48] sm:$0xff] %vm529, %v624
          %661 = vst.msk [vmem:[#allocation2 + $0x50] sm:$0xff] %vm529, %v629
          %662 = vst.msk [vmem:[#allocation2 + $0x58] sm:$0xff] %vm529, %v632
          %663 = vst.msk [vmem:[#allocation2 + $0x60] sm:$0xff] %vm529, %v637
          %664 = vst.msk [vmem:[#allocation2 + $0x68] sm:$0xff] %vm529, %v640
          %665 = vst.msk [vmem:[#allocation2 + $0x70] sm:$0xff] %vm529, %v645
          %666 = vst.msk [vmem:[#allocation2 + $0x78] sm:$0xff] %vm529, %v648
          %vm667 = vcmask 7168
          %668 = vst.msk [vmem:[#allocation3] sm:$0xff] %vm667, -9e+15
          %669 = vst.msk [vmem:[#allocation3 + $0x8] sm:$0xff] %vm667, -9e+15
          %670 = vst.msk [vmem:[#allocation3 + $0x10] sm:$0xff] %vm667, -9e+15
          %671 = vst.msk [vmem:[#allocation3 + $0x18] sm:$0xff] %vm667, -9e+15
          %672 = vst.msk [vmem:[#allocation3 + $0x20] sm:$0xff] %vm667, -9e+15
          %673 = vst.msk [vmem:[#allocation3 + $0x28] sm:$0xff] %vm667, -9e+15
          %674 = vst.msk [vmem:[#allocation3 + $0x30] sm:$0xff] %vm667, -9e+15
          %675 = vst.msk [vmem:[#allocation3 + $0x38] sm:$0xff] %vm667, -9e+15
          %676 = vst.msk [vmem:[#allocation3 + $0x40] sm:$0xff] %vm667, -9e+15
          %677 = vst.msk [vmem:[#allocation3 + $0x48] sm:$0xff] %vm667, -9e+15
          %678 = vst.msk [vmem:[#allocation3 + $0x50] sm:$0xff] %vm667, -9e+15
          %679 = vst.msk [vmem:[#allocation3 + $0x58] sm:$0xff] %vm667, -9e+15
          %680 = vst.msk [vmem:[#allocation3 + $0x60] sm:$0xff] %vm667, -9e+15
          %681 = vst.msk [vmem:[#allocation3 + $0x68] sm:$0xff] %vm667, -9e+15
          %682 = vst.msk [vmem:[#allocation3 + $0x70] sm:$0xff] %vm667, -9e+15
          %683 = vst.msk [vmem:[#allocation3 + $0x78] sm:$0xff] %vm667, -9e+15
          %684 = vst.msk [vmem:[#allocation4] sm:$0xff] %vm667, 0.0
          %685 = vst.msk [vmem:[#allocation4 + $0x8] sm:$0xff] %vm667, 0.0
          %686 = vst.msk [vmem:[#allocation4 + $0x10] sm:$0xff] %vm667, 0.0
          %687 = vst.msk [vmem:[#allocation4 + $0x18] sm:$0xff] %vm667, 0.0
          %688 = vst.msk [vmem:[#allocation4 + $0x20] sm:$0xff] %vm667, 0.0
          %689 = vst.msk [vmem:[#allocation4 + $0x28] sm:$0xff] %vm667, 0.0
          %690 = vst.msk [vmem:[#allocation4 + $0x30] sm:$0xff] %vm667, 0.0
          %691 = vst.msk [vmem:[#allocation4 + $0x38] sm:$0xff] %vm667, 0.0
          %692 = vst.msk [vmem:[#allocation4 + $0x40] sm:$0xff] %vm667, 0.0
          %693 = vst.msk [vmem:[#allocation4 + $0x48] sm:$0xff] %vm667, 0.0
          %694 = vst.msk [vmem:[#allocation4 + $0x50] sm:$0xff] %vm667, 0.0
          %695 = vst.msk [vmem:[#allocation4 + $0x58] sm:$0xff] %vm667, 0.0
          %696 = vst.msk [vmem:[#allocation4 + $0x60] sm:$0xff] %vm667, 0.0
          %697 = vst.msk [vmem:[#allocation4 + $0x68] sm:$0xff] %vm667, 0.0
          %698 = vst.msk [vmem:[#allocation4 + $0x70] sm:$0xff] %vm667, 0.0
          %699 = vst.msk [vmem:[#allocation4 + $0x78] sm:$0xff] %vm667, 0.0
          %700 = vst.msk [vmem:[#allocation5] sm:$0xff] %vm529, 0.0
          %701 = vst.msk [vmem:[#allocation5 + $0x8] sm:$0xff] %vm529, 0.0
          %702 = vst.msk [vmem:[#allocation5 + $0x10] sm:$0xff] %vm529, 0.0
          %703 = vst.msk [vmem:[#allocation5 + $0x18] sm:$0xff] %vm529, 0.0
          %704 = vst.msk [vmem:[#allocation5 + $0x20] sm:$0xff] %vm529, 0.0
          %705 = vst.msk [vmem:[#allocation5 + $0x28] sm:$0xff] %vm529, 0.0
          %706 = vst.msk [vmem:[#allocation5 + $0x30] sm:$0xff] %vm529, 0.0
          %707 = vst.msk [vmem:[#allocation5 + $0x38] sm:$0xff] %vm529, 0.0
          %708 = vst.msk [vmem:[#allocation5 + $0x40] sm:$0xff] %vm529, 0.0
          %709 = vst.msk [vmem:[#allocation5 + $0x48] sm:$0xff] %vm529, 0.0
          %710 = vst.msk [vmem:[#allocation5 + $0x50] sm:$0xff] %vm529, 0.0
          %711 = vst.msk [vmem:[#allocation5 + $0x58] sm:$0xff] %vm529, 0.0
          %712 = vst.msk [vmem:[#allocation5 + $0x60] sm:$0xff] %vm529, 0.0
          %713 = vst.msk [vmem:[#allocation5 + $0x68] sm:$0xff] %vm529, 0.0
          %714 = vst.msk [vmem:[#allocation5 + $0x70] sm:$0xff] %vm529, 0.0
          %715 = vst.msk [vmem:[#allocation5 + $0x78] sm:$0xff] %vm529, 0.0
        $region93: #{tpu_custom_call.1} parent=84 // pred_fallthru
          _
        %v716 = vld [vmem:[%s472] sm:$0xff]
        %v717 = vld [vmem:[%s472 + $0x8] sm:$0xff]
        %v718 = vld [vmem:[%s472 + $0x10] sm:$0xff]
        %v719 = vld [vmem:[%s472 + $0x18] sm:$0xff]
        %v720 = vld [vmem:[%s472 + $0x20] sm:$0xff]
        %v721 = vld [vmem:[%s472 + $0x28] sm:$0xff]
        %v722 = vld [vmem:[%s472 + $0x30] sm:$0xff]
        %v723 = vld [vmem:[%s472 + $0x38] sm:$0xff]
        %v724 = vld [vmem:[%s472 + $0x40] sm:$0xff]
        %v725 = vld [vmem:[%s472 + $0x48] sm:$0xff]
        %v726 = vld [vmem:[%s472 + $0x50] sm:$0xff]
        %v727 = vld [vmem:[%s472 + $0x58] sm:$0xff]
        %v728 = vld [vmem:[%s472 + $0x60] sm:$0xff]
        %v729 = vld [vmem:[%s472 + $0x68] sm:$0xff]
        %v730 = vld [vmem:[%s472 + $0x70] sm:$0xff]
        %v731 = vld [vmem:[%s472 + $0x78] sm:$0xff]
        %v732 = vpack.c.bf16 %v717, %v716
        %v733 = vpack.c.bf16 %v719, %v718
        %v734 = vpack.c.bf16 %v721, %v720
        %v735 = vpack.c.bf16 %v723, %v722
        %v736 = vpack.c.bf16 %v725, %v724
        %v737 = vpack.c.bf16 %v727, %v726
        %v738 = vpack.c.bf16 %v729, %v728
        %v739 = vpack.c.bf16 %v731, %v730
        %v740 = vld [vmem:[%s3] sm:$0xf]
        %v741 = vld [vmem:[%s3 + $0x4] sm:$0xf]
        %v742 = vld [vmem:[%s3 + $0x8] sm:$0xf]
        %v743 = vld [vmem:[%s3 + $0xc] sm:$0xf]
        %v748 = vunpack.c.l.b16 %v740
        %v749 = vunpack.c.l.b16 %v741
        %v750 = vunpack.c.l.b16 %v742
        %v751 = vunpack.c.l.b16 %v743
        %v752 = vpack.c.b16 %v749, %v748
        %v753 = vpack.c.b16 %v751, %v750
        %vm756 = vcmask 261120
        %v758 = vsel %vm756, %v732, 0
        %v761 = vsel %vm756, %v733, 0
        %v764 = vsel %vm756, %v734, 0
        %v767 = vsel %vm756, %v735, 0
        %v770 = vsel %vm756, %v736, 0
        %v773 = vsel %vm756, %v737, 0
        %v776 = vsel %vm756, %v738, 0
        %v779 = vsel %vm756, %v739, 0
        %781 = vmatprep.subr.bf16.mxu0 0
        %782 = vmatpush1.bf16.msra.mxu0 %v752
        %783 = vmatprep.subr.bf16.mxu0 0
        %784 = vmatpush1.bf16.msra.mxu0 %v753
        %785 = vmatprep.subr.bf16.mxu0 0
        %786 = vmatpush1.bf16.msra.mxu0 0
        %787 = vmatprep.subr.bf16.mxu0 0
        %788 = vmatpush1.bf16.msra.mxu0 0
        %789 = vmatprep.subr.bf16.mxu0 0
        %790 = vmatpush1.bf16.msra.mxu0 0
        %791 = vmatprep.subr.bf16.mxu0 0
        %792 = vmatpush1.bf16.msra.mxu0 0
        %793 = vmatprep.subr.bf16.mxu0 0
        %794 = vmatpush1.bf16.msra.mxu0 0
        %795 = vmatprep.subr.bf16.mxu0 0
        %796 = vmatpush1.bf16.msra.mxu0 0
        %797 = vmatprep.subr.bf16.mxu0 0
        %798 = vmatpush1.bf16.msra.mxu0 0
        %799 = vmatprep.subr.bf16.mxu0 0
        %800 = vmatpush1.bf16.msra.mxu0 0
        %801 = vmatprep.subr.bf16.mxu0 0
        %802 = vmatpush1.bf16.msra.mxu0 0
        %803 = vmatprep.subr.bf16.mxu0 0
        %804 = vmatpush1.bf16.msra.mxu0 0
        %805 = vmatprep.subr.bf16.mxu0 0
        %806 = vmatpush1.bf16.msra.mxu0 0
        %807 = vmatprep.subr.bf16.mxu0 0
        %808 = vmatpush1.bf16.msra.mxu0 0
        %809 = vmatprep.subr.bf16.mxu0 0
        %810 = vmatpush1.bf16.msra.mxu0 0
        %811 = vmatprep.subr.bf16.mxu0 0
        %812 = vmatpush1.bf16.msra.mxu0 0
        %813 = vmatprep.mubr.bf16.mxu0 0
        %814 = vmatmul.mubr.bf16.gmra.mrb[0].mxu0 %v758
        %v815 = vpop.f32.mrb[0].mxu0
        %v816 = vadd.f32 0.0, %v815
        %v817 = vpop.f32.mrb[0].mxu0
        %v818 = vpop.f32.mrb[0].mxu0
        %v819 = vadd.f32 0.0, %v818
        %v820 = vpop.f32.mrb[0].mxu0
        %821 = vmatprep.mubr.bf16.mxu0 0
        %822 = vmatmul.mubr.bf16.gmra.mrb[0].mxu0 %v761
        %v823 = vpop.f32.mrb[0].mxu0
        %v824 = vadd.f32 0.0, %v823
        %v825 = vpop.f32.mrb[0].mxu0
        %v826 = vpop.f32.mrb[0].mxu0
        %v827 = vadd.f32 0.0, %v826
        %v828 = vpop.f32.mrb[0].mxu0
        %829 = vmatprep.mubr.bf16.mxu0 0
        %830 = vmatmul.mubr.bf16.gmra.mrb[0].mxu0 %v764
        %v831 = vpop.f32.mrb[0].mxu0
        %v832 = vadd.f32 0.0, %v831
        %v833 = vpop.f32.mrb[0].mxu0
        %v834 = vpop.f32.mrb[0].mxu0
        %v835 = vadd.f32 0.0, %v834
        %v836 = vpop.f32.mrb[0].mxu0
        %837 = vmatprep.mubr.bf16.mxu0 0
        %838 = vmatmul.mubr.bf16.gmra.mrb[0].mxu0 %v767
        %v839 = vpop.f32.mrb[0].mxu0
        %v840 = vadd.f32 0.0, %v839
        %v841 = vpop.f32.mrb[0].mxu0
        %v842 = vpop.f32.mrb[0].mxu0
        %v843 = vadd.f32 0.0, %v842
        %v844 = vpop.f32.mrb[0].mxu0
        %845 = vmatprep.mubr.bf16.mxu0 0
        %846 = vmatmul.mubr.bf16.gmra.mrb[0].mxu0 %v770
        %v847 = vpop.f32.mrb[0].mxu0
        %v848 = vadd.f32 0.0, %v847
        %v849 = vpop.f32.mrb[0].mxu0
        %v850 = vpop.f32.mrb[0].mxu0
        %v851 = vadd.f32 0.0, %v850
        %v852 = vpop.f32.mrb[0].mxu0
        %853 = vmatprep.mubr.bf16.mxu0 0
        %854 = vmatmul.mubr.bf16.gmra.mrb[0].mxu0 %v773
        %v855 = vpop.f32.mrb[0].mxu0
        %v856 = vadd.f32 0.0, %v855
        %v857 = vpop.f32.mrb[0].mxu0
        %v858 = vpop.f32.mrb[0].mxu0
        %v859 = vadd.f32 0.0, %v858
        %v860 = vpop.f32.mrb[0].mxu0
        %861 = vmatprep.mubr.bf16.mxu0 0
        %862 = vmatmul.mubr.bf16.gmra.mrb[0].mxu0 %v776
        %v863 = vpop.f32.mrb[0].mxu0
        %v864 = vadd.f32 0.0, %v863
        %v865 = vpop.f32.mrb[0].mxu0
        %v866 = vpop.f32.mrb[0].mxu0
        %v867 = vadd.f32 0.0, %v866
        %v868 = vpop.f32.mrb[0].mxu0
        %869 = vmatprep.mubr.bf16.mxu0 0
        %870 = vmatmul.mubr.bf16.gmra.mrb[0].mxu0 %v779
        %v871 = vpop.f32.mrb[0].mxu0
        %v872 = vadd.f32 0.0, %v871
        %v873 = vpop.f32.mrb[0].mxu0
        %v874 = vpop.f32.mrb[0].mxu0
        %v875 = vadd.f32 0.0, %v874
        %v876 = vpop.f32.mrb[0].mxu0
        %877 = vdwg.mxu0
        %v878 = vld [vmem:[#allocation2] sm:$0xff]
        %v879 = vld [vmem:[#allocation2 + $0x8] sm:$0xff]
        %v880 = vld [vmem:[#allocation2 + $0x10] sm:$0xff]
        %v881 = vld [vmem:[#allocation2 + $0x18] sm:$0xff]
        %v882 = vld [vmem:[#allocation2 + $0x20] sm:$0xff]
        %v883 = vld [vmem:[#allocation2 + $0x28] sm:$0xff]
        %v884 = vld [vmem:[#allocation2 + $0x30] sm:$0xff]
        %v885 = vld [vmem:[#allocation2 + $0x38] sm:$0xff]
        %v886 = vld [vmem:[#allocation2 + $0x40] sm:$0xff]
        %v887 = vld [vmem:[#allocation2 + $0x48] sm:$0xff]
        %v888 = vld [vmem:[#allocation2 + $0x50] sm:$0xff]
        %v889 = vld [vmem:[#allocation2 + $0x58] sm:$0xff]
        %v890 = vld [vmem:[#allocation2 + $0x60] sm:$0xff]
        %v891 = vld [vmem:[#allocation2 + $0x68] sm:$0xff]
        %v892 = vld [vmem:[#allocation2 + $0x70] sm:$0xff]
        %v893 = vld [vmem:[#allocation2 + $0x78] sm:$0xff]
        %v894 = vld [vmem:[%s4] sm:$0x1]
        %v896 = vlaneseq
        %v897 = vshrl.u32 %v896, 7
        %v898 = vsub.s32 0, %v897
        %v899 = vrot.slane %v894, %v898
        %v901 = vmul.f32 %v878, %v899
        %v902 = vmul.f32 %v879, %v899
        %v903 = vmul.f32 %v880, %v899
        %v904 = vmul.f32 %v881, %v899
        %v905 = vmul.f32 %v882, %v899
        %v906 = vmul.f32 %v883, %v899
        %v907 = vmul.f32 %v884, %v899
        %v908 = vmul.f32 %v885, %v899
        %v909 = vmul.f32 %v886, %v899
        %v910 = vmul.f32 %v887, %v899
        %v911 = vmul.f32 %v888, %v899
        %v912 = vmul.f32 %v889, %v899
        %v913 = vmul.f32 %v890, %v899
        %v914 = vmul.f32 %v891, %v899
        %v915 = vmul.f32 %v892, %v899
        %v916 = vmul.f32 %v893, %v899
        %v917 = vsel %vm756, %v901, 0.0
        %918 = vadd.xlane.f32.xlu0 %v917
        %v919 = vpop.xlane.xlu0 %918
        %v920 = vsel %vm756, %v902, 0.0
        %921 = vadd.xlane.f32.xlu0 %v920
        %v922 = vpop.xlane.xlu0 %921
        %v923 = vsel %vm756, %v903, 0.0
        %924 = vadd.xlane.f32.xlu0 %v923
        %v925 = vpop.xlane.xlu0 %924
        %v926 = vsel %vm756, %v904, 0.0
        %927 = vadd.xlane.f32.xlu0 %v926
        %v928 = vpop.xlane.xlu0 %927
        %v929 = vsel %vm756, %v905, 0.0
        %930 = vadd.xlane.f32.xlu0 %v929
        %v931 = vpop.xlane.xlu0 %930
        %v932 = vsel %vm756, %v906, 0.0
        %933 = vadd.xlane.f32.xlu0 %v932
        %v934 = vpop.xlane.xlu0 %933
        %v935 = vsel %vm756, %v907, 0.0
        %936 = vadd.xlane.f32.xlu0 %v935
        %v937 = vpop.xlane.xlu0 %936
        %v938 = vsel %vm756, %v908, 0.0
        %939 = vadd.xlane.f32.xlu0 %v938
        %v940 = vpop.xlane.xlu0 %939
        %v941 = vsel %vm756, %v909, 0.0
        %942 = vadd.xlane.f32.xlu0 %v941
        %v943 = vpop.xlane.xlu0 %942
        %v944 = vsel %vm756, %v910, 0.0
        %945 = vadd.xlane.f32.xlu0 %v944
        %v946 = vpop.xlane.xlu0 %945
        %v947 = vsel %vm756, %v911, 0.0
        %948 = vadd.xlane.f32.xlu0 %v947
        %v949 = vpop.xlane.xlu0 %948
        %v950 = vsel %vm756, %v912, 0.0
        %951 = vadd.xlane.f32.xlu0 %v950
        %v952 = vpop.xlane.xlu0 %951
        %v953 = vsel %vm756, %v913, 0.0
        %954 = vadd.xlane.f32.xlu0 %v953
        %v955 = vpop.xlane.xlu0 %954
        %v956 = vsel %vm756, %v914, 0.0
        %957 = vadd.xlane.f32.xlu0 %v956
        %v958 = vpop.xlane.xlu0 %957
        %v959 = vsel %vm756, %v915, 0.0
        %960 = vadd.xlane.f32.xlu0 %v959
        %v961 = vpop.xlane.xlu0 %960
        %v962 = vsel %vm756, %v916, 0.0
        %963 = vadd.xlane.f32.xlu0 %v962
        %v964 = vpop.xlane.xlu0 %963
        %v965 = vld [vmem:[%s5] sm:$0x1]
        %v967 = vsel %vm756, %v965, 0
        %v970 = vsel %vm756, %v816, 0
        %v973 = vsel %vm756, %v819, 0
        %v976 = vsel %vm756, %v824, 0
        %v979 = vsel %vm756, %v827, 0
        %v982 = vsel %vm756, %v832, 0
        %v985 = vsel %vm756, %v835, 0
        %v988 = vsel %vm756, %v840, 0
        %v991 = vsel %vm756, %v843, 0
        %v994 = vsel %vm756, %v848, 0
        %v997 = vsel %vm756, %v851, 0
        %v1000 = vsel %vm756, %v856, 0
        %v1003 = vsel %vm756, %v859, 0
        %v1006 = vsel %vm756, %v864, 0
        %v1009 = vsel %vm756, %v867, 0
        %v1012 = vsel %vm756, %v872, 0
        %v1015 = vsel %vm756, %v875, 0
        %1017 = vmatprep.subr.mxu0 0.0
        %1018 = vmatpush1.xpose.msra.mxu0 %v970
        %1019 = vmatprep.subr.mxu0 0.0
        %1020 = vmatpush1.xpose.msra.mxu0 %v973
        %1021 = vmatprep.subr.mxu0 0.0
        %1022 = vmatpush1.xpose.msra.mxu0 %v976
        %1023 = vmatprep.subr.mxu0 0.0
        %1024 = vmatpush1.xpose.msra.mxu0 %v979
        %1025 = vmatprep.subr.mxu0 0.0
        %1026 = vmatpush1.xpose.msra.mxu0 %v982
        %1027 = vmatprep.subr.mxu0 0.0
        %1028 = vmatpush1.xpose.msra.mxu0 %v985
        %1029 = vmatprep.subr.mxu0 0.0
        %1030 = vmatpush1.xpose.msra.mxu0 %v988
        %1031 = vmatprep.subr.mxu0 0.0
        %1032 = vmatpush1.xpose.msra.mxu0 %v991
        %1033 = vmatprep.subr.mxu0 0.0
        %1034 = vmatpush1.xpose.msra.mxu0 %v994
        %1035 = vmatprep.subr.mxu0 0.0
        %1036 = vmatpush1.xpose.msra.mxu0 %v997
        %1037 = vmatprep.subr.mxu0 0.0
        %1038 = vmatpush1.xpose.msra.mxu0 %v1000
        %1039 = vmatprep.subr.mxu0 0.0
        %1040 = vmatpush1.xpose.msra.mxu0 %v1003
        %1041 = vmatprep.subr.mxu0 0.0
        %1042 = vmatpush1.xpose.msra.mxu0 %v1006
        %1043 = vmatprep.subr.mxu0 0.0
        %1044 = vmatpush1.xpose.msra.mxu0 %v1009
        %1045 = vmatprep.subr.mxu0 0.0
        %1046 = vmatpush1.xpose.msra.mxu0 %v1012
        %1047 = vmatprep.subr.mxu0 0.0
        %1048 = vmatpush1.xpose.msra.mxu0 %v1015
        %1049 = vmatprep.subr.mxu0 0.0
        %1050 = vmatpush1.xpose.msra.mxu0 0.0
        %1051 = vmatprep.subr.mxu0 0.0
        %1052 = vmatpush1.xpose.msra.mxu0 0.0
        %1053 = vmatprep.subr.mxu0 0.0
        %1054 = vmatpush1.xpose.msra.mxu0 0.0
        %1055 = vmatprep.subr.mxu0 0.0
        %1056 = vmatpush1.xpose.msra.mxu0 0.0
        %1057 = vmatprep.subr.mxu0 0.0
        %1058 = vmatpush1.xpose.msra.mxu0 0.0
        %1059 = vmatprep.subr.mxu0 0.0
        %1060 = vmatpush1.xpose.msra.mxu0 0.0
        %1061 = vmatprep.subr.mxu0 0.0
        %1062 = vmatpush1.xpose.msra.mxu0 0.0
        %1063 = vmatprep.subr.mxu0 0.0
        %1064 = vmatpush1.xpose.msra.mxu0 0.0
        %1065 = vmatprep.subr.mxu0 0.0
        %1066 = vmatpush1.xpose.msra.mxu0 0.0
        %1067 = vmatprep.subr.mxu0 0.0
        %1068 = vmatpush1.xpose.msra.mxu0 0.0
        %1069 = vmatprep.subr.mxu0 0.0
        %1070 = vmatpush1.xpose.msra.mxu0 0.0
        %1071 = vmatprep.subr.mxu0 0.0
        %1072 = vmatpush1.xpose.msra.mxu0 0.0
        %1073 = vmatprep.subr.mxu0 0.0
        %1074 = vmatpush1.xpose.msra.mxu0 0.0
        %1075 = vmatprep.subr.mxu0 0.0
        %1076 = vmatpush1.xpose.msra.mxu0 0.0
        %1077 = vmatprep.subr.mxu0 0.0
        %1078 = vmatpush1.xpose.msra.mxu0 0.0
        %1079 = vmatprep.subr.mxu0 0.0
        %1080 = vmatpush1.xpose.msra.mxu0 0.0
        %1081 = vmatprep.mubr.f32.mxu0 0.0
        %1082 = vmatmul.mubr.f32.gmra.mrb[0].mxu0 %v967
        %v1083 = vpop.f32.mrb[0].mxu0
        %v1084 = vadd.f32 0.0, %v1083
        %v1085 = vpop.f32.mrb[0].mxu0
        %1086 = vdwg.mxu0
        %v1087 = vlaneseq
        %v1088 = vshrl.u32 %v1087, 7
        %v1089 = vsub.s32 0, %v1088
        %v1090 = vrot.slane %v1084, %v1089
        %v1091 = vadd.f32 %v919, %v1090
        %v1092 = vadd.f32 %v922, %v1090
        %v1093 = vadd.f32 %v925, %v1090
        %v1094 = vadd.f32 %v928, %v1090
        %v1095 = vadd.f32 %v931, %v1090
        %v1096 = vadd.f32 %v934, %v1090
        %v1097 = vadd.f32 %v937, %v1090
        %v1098 = vadd.f32 %v940, %v1090
        %v1099 = vadd.f32 %v943, %v1090
        %v1100 = vadd.f32 %v946, %v1090
        %v1101 = vadd.f32 %v949, %v1090
        %v1102 = vadd.f32 %v952, %v1090
        %v1103 = vadd.f32 %v955, %v1090
        %v1104 = vadd.f32 %v958, %v1090
        %v1105 = vadd.f32 %v961, %v1090
        %v1106 = vadd.f32 %v964, %v1090
        %vm1107 = vcmp.gt.f32.partialorder %v1091, 0.0
        %vm1108 = vcmp.gt.f32.partialorder %v1092, 0.0
        %vm1109 = vcmp.gt.f32.partialorder %v1093, 0.0
        %vm1110 = vcmp.gt.f32.partialorder %v1094, 0.0
        %vm1111 = vcmp.gt.f32.partialorder %v1095, 0.0
        %vm1112 = vcmp.gt.f32.partialorder %v1096, 0.0
        %vm1113 = vcmp.gt.f32.partialorder %v1097, 0.0
        %vm1114 = vcmp.gt.f32.partialorder %v1098, 0.0
        %vm1115 = vcmp.gt.f32.partialorder %v1099, 0.0
        %vm1116 = vcmp.gt.f32.partialorder %v1100, 0.0
        %vm1117 = vcmp.gt.f32.partialorder %v1101, 0.0
        %vm1118 = vcmp.gt.f32.partialorder %v1102, 0.0
        %vm1119 = vcmp.gt.f32.partialorder %v1103, 0.0
        %vm1120 = vcmp.gt.f32.partialorder %v1104, 0.0
        %vm1121 = vcmp.gt.f32.partialorder %v1105, 0.0
        %vm1122 = vcmp.gt.f32.partialorder %v1106, 0.0
        %v1123 = vmul.f32 %v1091, 0.2
        %v1124 = vmul.f32 %v1092, 0.2
        %v1125 = vmul.f32 %v1093, 0.2
        %v1126 = vmul.f32 %v1094, 0.2
        %v1127 = vmul.f32 %v1095, 0.2
        %v1128 = vmul.f32 %v1096, 0.2
        %v1129 = vmul.f32 %v1097, 0.2
        %v1130 = vmul.f32 %v1098, 0.2
        %v1131 = vmul.f32 %v1099, 0.2
        %v1132 = vmul.f32 %v1100, 0.2
        %v1133 = vmul.f32 %v1101, 0.2
        %v1134 = vmul.f32 %v1102, 0.2
        %v1135 = vmul.f32 %v1103, 0.2
        %v1136 = vmul.f32 %v1104, 0.2
        %v1137 = vmul.f32 %v1105, 0.2
        %v1138 = vmul.f32 %v1106, 0.2
        %v1139 = vsel %vm1107, %v1091, %v1123
        %v1140 = vsel %vm1108, %v1092, %v1124
        %v1141 = vsel %vm1109, %v1093, %v1125
        %v1142 = vsel %vm1110, %v1094, %v1126
        %v1143 = vsel %vm1111, %v1095, %v1127
        %v1144 = vsel %vm1112, %v1096, %v1128
        %v1145 = vsel %vm1113, %v1097, %v1129
        %v1146 = vsel %vm1114, %v1098, %v1130
        %v1147 = vsel %vm1115, %v1099, %v1131
        %v1148 = vsel %vm1116, %v1100, %v1132
        %v1149 = vsel %vm1117, %v1101, %v1133
        %v1150 = vsel %vm1118, %v1102, %v1134
        %v1151 = vsel %vm1119, %v1103, %v1135
        %v1152 = vsel %vm1120, %v1104, %v1136
        %v1153 = vsel %vm1121, %v1105, %v1137
        %v1154 = vsel %vm1122, %v1106, %v1138
        %v1155 = vld [vmem:[%s416] sm:$0xf]
        %v1156 = vld [vmem:[%s416 + $0x4] sm:$0xf]
        %v1157 = vld [vmem:[%s416 + $0x8] sm:$0xf]
        %v1158 = vld [vmem:[%s416 + $0xc] sm:$0xf]
        %v1159 = vld [vmem:[%s416 + $0x10] sm:$0xf]
        %v1160 = vld [vmem:[%s416 + $0x14] sm:$0xf]
        %v1161 = vld [vmem:[%s416 + $0x18] sm:$0xf]
        %v1162 = vld [vmem:[%s416 + $0x1c] sm:$0xf]
        %v1163 = vld [vmem:[%s416 + $0x20] sm:$0xf]
        %v1164 = vld [vmem:[%s416 + $0x24] sm:$0xf]
        %v1165 = vld [vmem:[%s416 + $0x28] sm:$0xf]
        %v1166 = vld [vmem:[%s416 + $0x2c] sm:$0xf]
        %v1167 = vld [vmem:[%s416 + $0x30] sm:$0xf]
        %v1168 = vld [vmem:[%s416 + $0x34] sm:$0xf]
        %v1169 = vld [vmem:[%s416 + $0x38] sm:$0xf]
        %v1170 = vld [vmem:[%s416 + $0x3c] sm:$0xf]
        %vm1171 = vcmp.gt.bf16.partialorder %v1155, 0
        %vm1172 = vcmp.gt.bf16.partialorder %v1156, 0
        %vm1173 = vcmp.gt.bf16.partialorder %v1157, 0
        %vm1174 = vcmp.gt.bf16.partialorder %v1158, 0
        %vm1175 = vcmp.gt.bf16.partialorder %v1159, 0
        %vm1176 = vcmp.gt.bf16.partialorder %v1160, 0
        %vm1177 = vcmp.gt.bf16.partialorder %v1161, 0
        %vm1178 = vcmp.gt.bf16.partialorder %v1162, 0
        %vm1179 = vcmp.gt.bf16.partialorder %v1163, 0
        %vm1180 = vcmp.gt.bf16.partialorder %v1164, 0
        %vm1181 = vcmp.gt.bf16.partialorder %v1165, 0
        %vm1182 = vcmp.gt.bf16.partialorder %v1166, 0
        %vm1183 = vcmp.gt.bf16.partialorder %v1167, 0
        %vm1184 = vcmp.gt.bf16.partialorder %v1168, 0
        %vm1185 = vcmp.gt.bf16.partialorder %v1169, 0
        %vm1186 = vcmp.gt.bf16.partialorder %v1170, 0
        %v1187 = vsel %vm1171, 65537, 0
        %v1188 = vsel %vm1172, 65537, 0
        %v1189 = vsel %vm1173, 65537, 0
        %v1190 = vsel %vm1174, 65537, 0
        %v1191 = vsel %vm1175, 65537, 0
        %v1192 = vsel %vm1176, 65537, 0
        %v1193 = vsel %vm1177, 65537, 0
        %v1194 = vsel %vm1178, 65537, 0
        %v1195 = vsel %vm1179, 65537, 0
        %v1196 = vsel %vm1180, 65537, 0
        %v1197 = vsel %vm1181, 65537, 0
        %v1198 = vsel %vm1182, 65537, 0
        %v1199 = vsel %vm1183, 65537, 0
        %v1200 = vsel %vm1184, 65537, 0
        %v1201 = vsel %vm1185, 65537, 0
        %v1202 = vsel %vm1186, 65537, 0
        %v1203 = vunpack.c.l.b16 %v1187
        %v1204 = vunpack.c.l.b16 %v1188
        %v1205 = vunpack.c.l.b16 %v1189
        %v1206 = vunpack.c.l.b16 %v1190
        %v1207 = vunpack.c.l.b16 %v1191
        %v1208 = vunpack.c.l.b16 %v1192
        %v1209 = vunpack.c.l.b16 %v1193
        %v1210 = vunpack.c.l.b16 %v1194
        %v1211 = vunpack.c.l.b16 %v1195
        %v1212 = vunpack.c.l.b16 %v1196
        %v1213 = vunpack.c.l.b16 %v1197
        %v1214 = vunpack.c.l.b16 %v1198
        %v1215 = vunpack.c.l.b16 %v1199
        %v1216 = vunpack.c.l.b16 %v1200
        %v1217 = vunpack.c.l.b16 %v1201
        %v1218 = vunpack.c.l.b16 %v1202
        %vm1219 = vcmp.ne.s32.totalorder %v1203, 0
        %vm1220 = vcmp.ne.s32.totalorder %v1204, 0
        %vm1221 = vcmp.ne.s32.totalorder %v1205, 0
        %vm1222 = vcmp.ne.s32.totalorder %v1206, 0
        %vm1223 = vcmp.ne.s32.totalorder %v1207, 0
        %vm1224 = vcmp.ne.s32.totalorder %v1208, 0
        %vm1225 = vcmp.ne.s32.totalorder %v1209, 0
        %vm1226 = vcmp.ne.s32.totalorder %v1210, 0
        %vm1227 = vcmp.ne.s32.totalorder %v1211, 0
        %vm1228 = vcmp.ne.s32.totalorder %v1212, 0
        %vm1229 = vcmp.ne.s32.totalorder %v1213, 0
        %vm1230 = vcmp.ne.s32.totalorder %v1214, 0
        %vm1231 = vcmp.ne.s32.totalorder %v1215, 0
        %vm1232 = vcmp.ne.s32.totalorder %v1216, 0
        %vm1233 = vcmp.ne.s32.totalorder %v1217, 0
        %vm1234 = vcmp.ne.s32.totalorder %v1218, 0
        %v1235 = vsel %vm1219, %v1139, -9e+15
        %v1236 = vsel %vm1220, %v1140, -9e+15
        %v1237 = vsel %vm1221, %v1141, -9e+15
        %v1238 = vsel %vm1222, %v1142, -9e+15
        %v1239 = vsel %vm1223, %v1143, -9e+15
        %v1240 = vsel %vm1224, %v1144, -9e+15
        %v1241 = vsel %vm1225, %v1145, -9e+15
        %v1242 = vsel %vm1226, %v1146, -9e+15
        %v1243 = vsel %vm1227, %v1147, -9e+15
        %v1244 = vsel %vm1228, %v1148, -9e+15
        %v1245 = vsel %vm1229, %v1149, -9e+15
        %v1246 = vsel %vm1230, %v1150, -9e+15
        %v1247 = vsel %vm1231, %v1151, -9e+15
        %v1248 = vsel %vm1232, %v1152, -9e+15
        %v1249 = vsel %vm1233, %v1153, -9e+15
        %v1250 = vsel %vm1234, %v1154, -9e+15
        %v1251 = vld [vmem:[#allocation3] sm:$0xff]
        %v1252 = vld [vmem:[#allocation3 + $0x8] sm:$0xff]
        %v1253 = vld [vmem:[#allocation3 + $0x10] sm:$0xff]
        %v1254 = vld [vmem:[#allocation3 + $0x18] sm:$0xff]
        %v1255 = vld [vmem:[#allocation3 + $0x20] sm:$0xff]
        %v1256 = vld [vmem:[#allocation3 + $0x28] sm:$0xff]
        %v1257 = vld [vmem:[#allocation3 + $0x30] sm:$0xff]
        %v1258 = vld [vmem:[#allocation3 + $0x38] sm:$0xff]
        %v1259 = vld [vmem:[#allocation3 + $0x40] sm:$0xff]
        %v1260 = vld [vmem:[#allocation3 + $0x48] sm:$0xff]
        %v1261 = vld [vmem:[#allocation3 + $0x50] sm:$0xff]
        %v1262 = vld [vmem:[#allocation3 + $0x58] sm:$0xff]
        %v1263 = vld [vmem:[#allocation3 + $0x60] sm:$0xff]
        %v1264 = vld [vmem:[#allocation3 + $0x68] sm:$0xff]
        %v1265 = vld [vmem:[#allocation3 + $0x70] sm:$0xff]
        %v1266 = vld [vmem:[#allocation3 + $0x78] sm:$0xff]
        %1267 = vmax.xlane.f32.xlu0 %v1235
        %v1268 = vpop.xlane.xlu0 %1267
        %1269 = vmax.xlane.f32.xlu0 %v1236
        %v1270 = vpop.xlane.xlu0 %1269
        %1271 = vmax.xlane.f32.xlu0 %v1237
        %v1272 = vpop.xlane.xlu0 %1271
        %1273 = vmax.xlane.f32.xlu0 %v1238
        %v1274 = vpop.xlane.xlu0 %1273
        %1275 = vmax.xlane.f32.xlu0 %v1239
        %v1276 = vpop.xlane.xlu0 %1275
        %1277 = vmax.xlane.f32.xlu0 %v1240
        %v1278 = vpop.xlane.xlu0 %1277
        %1279 = vmax.xlane.f32.xlu0 %v1241
        %v1280 = vpop.xlane.xlu0 %1279
        %1281 = vmax.xlane.f32.xlu0 %v1242
        %v1282 = vpop.xlane.xlu0 %1281
        %1283 = vmax.xlane.f32.xlu0 %v1243
        %v1284 = vpop.xlane.xlu0 %1283
        %1285 = vmax.xlane.f32.xlu0 %v1244
        %v1286 = vpop.xlane.xlu0 %1285
        %1287 = vmax.xlane.f32.xlu0 %v1245
        %v1288 = vpop.xlane.xlu0 %1287
        %1289 = vmax.xlane.f32.xlu0 %v1246
        %v1290 = vpop.xlane.xlu0 %1289
        %1291 = vmax.xlane.f32.xlu0 %v1247
        %v1292 = vpop.xlane.xlu0 %1291
        %1293 = vmax.xlane.f32.xlu0 %v1248
        %v1294 = vpop.xlane.xlu0 %1293
        %1295 = vmax.xlane.f32.xlu0 %v1249
        %v1296 = vpop.xlane.xlu0 %1295
        %1297 = vmax.xlane.f32.xlu0 %v1250
        %v1298 = vpop.xlane.xlu0 %1297
        %v1299 = vmax.f32 %v1251, %v1268
        %v1300 = vmax.f32 %v1252, %v1270
        %v1301 = vmax.f32 %v1253, %v1272
        %v1302 = vmax.f32 %v1254, %v1274
        %v1303 = vmax.f32 %v1255, %v1276
        %v1304 = vmax.f32 %v1256, %v1278
        %v1305 = vmax.f32 %v1257, %v1280
        %v1306 = vmax.f32 %v1258, %v1282
        %v1307 = vmax.f32 %v1259, %v1284
        %v1308 = vmax.f32 %v1260, %v1286
        %v1309 = vmax.f32 %v1261, %v1288
        %v1310 = vmax.f32 %v1262, %v1290
        %v1311 = vmax.f32 %v1263, %v1292
        %v1312 = vmax.f32 %v1264, %v1294
        %v1313 = vmax.f32 %v1265, %v1296
        %v1314 = vmax.f32 %v1266, %v1298
        %v1315 = vsub.f32 %v1251, %v1299
        %v1316 = vsub.f32 %v1252, %v1300
        %v1317 = vsub.f32 %v1253, %v1301
        %v1318 = vsub.f32 %v1254, %v1302
        %v1319 = vsub.f32 %v1255, %v1303
        %v1320 = vsub.f32 %v1256, %v1304
        %v1321 = vsub.f32 %v1257, %v1305
        %v1322 = vsub.f32 %v1258, %v1306
        %v1323 = vsub.f32 %v1259, %v1307
        %v1324 = vsub.f32 %v1260, %v1308
        %v1325 = vsub.f32 %v1261, %v1309
        %v1326 = vsub.f32 %v1262, %v1310
        %v1327 = vsub.f32 %v1263, %v1311
        %v1328 = vsub.f32 %v1264, %v1312
        %v1329 = vsub.f32 %v1265, %v1313
        %v1330 = vsub.f32 %v1266, %v1314
        %v1331 = vmul.f32 %v1315, 1.442695
        %v1332 = vpow.pop %v1331
        %v1333 = vmul.f32 %v1316, 1.442695
        %v1334 = vpow.pop %v1333
        %v1335 = vmul.f32 %v1317, 1.442695
        %v1336 = vpow.pop %v1335
        %v1337 = vmul.f32 %v1318, 1.442695
        %v1338 = vpow.pop %v1337
        %v1339 = vmul.f32 %v1319, 1.442695
        %v1340 = vpow.pop %v1339
        %v1341 = vmul.f32 %v1320, 1.442695
        %v1342 = vpow.pop %v1341
        %v1343 = vmul.f32 %v1321, 1.442695
        %v1344 = vpow.pop %v1343
        %v1345 = vmul.f32 %v1322, 1.442695
        %v1346 = vpow.pop %v1345
        %v1347 = vmul.f32 %v1323, 1.442695
        %v1348 = vpow.pop %v1347
        %v1349 = vmul.f32 %v1324, 1.442695
        %v1350 = vpow.pop %v1349
        %v1351 = vmul.f32 %v1325, 1.442695
        %v1352 = vpow.pop %v1351
        %v1353 = vmul.f32 %v1326, 1.442695
        %v1354 = vpow.pop %v1353
        %v1355 = vmul.f32 %v1327, 1.442695
        %v1356 = vpow.pop %v1355
        %v1357 = vmul.f32 %v1328, 1.442695
        %v1358 = vpow.pop %v1357
        %v1359 = vmul.f32 %v1329, 1.442695
        %v1360 = vpow.pop %v1359
        %v1361 = vmul.f32 %v1330, 1.442695
        %v1362 = vpow.pop %v1361
        %1364 = vset.pattern.permute.xlu0 0
        %1365 = vperm.xlu0 %1364, %v1299
        %v1366 = vpop.permute.xlu0 %1365
        %1369 = vset.pattern.permute.xlu0 0
        %1370 = vperm.xlu0 %1369, %v1300
        %v1371 = vpop.permute.xlu0 %1370
        %1374 = vset.pattern.permute.xlu0 0
        %1375 = vperm.xlu0 %1374, %v1301
        %v1376 = vpop.permute.xlu0 %1375
        %1379 = vset.pattern.permute.xlu0 0
        %1380 = vperm.xlu0 %1379, %v1302
        %v1381 = vpop.permute.xlu0 %1380
        %1384 = vset.pattern.permute.xlu0 0
        %1385 = vperm.xlu0 %1384, %v1303
        %v1386 = vpop.permute.xlu0 %1385
        %1389 = vset.pattern.permute.xlu0 0
        %1390 = vperm.xlu0 %1389, %v1304
        %v1391 = vpop.permute.xlu0 %1390
        %1394 = vset.pattern.permute.xlu0 0
        %1395 = vperm.xlu0 %1394, %v1305
        %v1396 = vpop.permute.xlu0 %1395
        %1399 = vset.pattern.permute.xlu0 0
        %1400 = vperm.xlu0 %1399, %v1306
        %v1401 = vpop.permute.xlu0 %1400
        %1404 = vset.pattern.permute.xlu0 0
        %1405 = vperm.xlu0 %1404, %v1307
        %v1406 = vpop.permute.xlu0 %1405
        %1409 = vset.pattern.permute.xlu0 0
        %1410 = vperm.xlu0 %1409, %v1308
        %v1411 = vpop.permute.xlu0 %1410
        %1414 = vset.pattern.permute.xlu0 0
        %1415 = vperm.xlu0 %1414, %v1309
        %v1416 = vpop.permute.xlu0 %1415
        %1419 = vset.pattern.permute.xlu0 0
        %1420 = vperm.xlu0 %1419, %v1310
        %v1421 = vpop.permute.xlu0 %1420
        %1424 = vset.pattern.permute.xlu0 0
        %1425 = vperm.xlu0 %1424, %v1311
        %v1426 = vpop.permute.xlu0 %1425
        %1429 = vset.pattern.permute.xlu0 0
        %1430 = vperm.xlu0 %1429, %v1312
        %v1431 = vpop.permute.xlu0 %1430
        %1434 = vset.pattern.permute.xlu0 0
        %1435 = vperm.xlu0 %1434, %v1313
        %v1436 = vpop.permute.xlu0 %1435
        %1439 = vset.pattern.permute.xlu0 0
        %1440 = vperm.xlu0 %1439, %v1314
        %v1441 = vpop.permute.xlu0 %1440
        %v1443 = vsub.f32 %v1235, %v1366
        %v1444 = vsub.f32 %v1236, %v1371
        %v1445 = vsub.f32 %v1237, %v1376
        %v1446 = vsub.f32 %v1238, %v1381
        %v1447 = vsub.f32 %v1239, %v1386
        %v1448 = vsub.f32 %v1240, %v1391
        %v1449 = vsub.f32 %v1241, %v1396
        %v1450 = vsub.f32 %v1242, %v1401
        %v1451 = vsub.f32 %v1243, %v1406
        %v1452 = vsub.f32 %v1244, %v1411
        %v1453 = vsub.f32 %v1245, %v1416
        %v1454 = vsub.f32 %v1246, %v1421
        %v1455 = vsub.f32 %v1247, %v1426
        %v1456 = vsub.f32 %v1248, %v1431
        %v1457 = vsub.f32 %v1249, %v1436
        %v1458 = vsub.f32 %v1250, %v1441
        %v1459 = vmul.f32 %v1443, 1.442695
        %v1460 = vpow.pop %v1459
        %v1461 = vmul.f32 %v1444, 1.442695
        %v1462 = vpow.pop %v1461
        %v1463 = vmul.f32 %v1445, 1.442695
        %v1464 = vpow.pop %v1463
        %v1465 = vmul.f32 %v1446, 1.442695
        %v1466 = vpow.pop %v1465
        %v1467 = vmul.f32 %v1447, 1.442695
        %v1468 = vpow.pop %v1467
        %v1469 = vmul.f32 %v1448, 1.442695
        %v1470 = vpow.pop %v1469
        %v1471 = vmul.f32 %v1449, 1.442695
        %v1472 = vpow.pop %v1471
        %v1473 = vmul.f32 %v1450, 1.442695
        %v1474 = vpow.pop %v1473
        %v1475 = vmul.f32 %v1451, 1.442695
        %v1476 = vpow.pop %v1475
        %v1477 = vmul.f32 %v1452, 1.442695
        %v1478 = vpow.pop %v1477
        %v1479 = vmul.f32 %v1453, 1.442695
        %v1480 = vpow.pop %v1479
        %v1481 = vmul.f32 %v1454, 1.442695
        %v1482 = vpow.pop %v1481
        %v1483 = vmul.f32 %v1455, 1.442695
        %v1484 = vpow.pop %v1483
        %v1485 = vmul.f32 %v1456, 1.442695
        %v1486 = vpow.pop %v1485
        %v1487 = vmul.f32 %v1457, 1.442695
        %v1488 = vpow.pop %v1487
        %v1489 = vmul.f32 %v1458, 1.442695
        %v1490 = vpow.pop %v1489
        %v1491 = vld [vmem:[#allocation4] sm:$0xff]
        %v1492 = vld [vmem:[#allocation4 + $0x8] sm:$0xff]
        %v1493 = vld [vmem:[#allocation4 + $0x10] sm:$0xff]
        %v1494 = vld [vmem:[#allocation4 + $0x18] sm:$0xff]
        %v1495 = vld [vmem:[#allocation4 + $0x20] sm:$0xff]
        %v1496 = vld [vmem:[#allocation4 + $0x28] sm:$0xff]
        %v1497 = vld [vmem:[#allocation4 + $0x30] sm:$0xff]
        %v1498 = vld [vmem:[#allocation4 + $0x38] sm:$0xff]
        %v1499 = vld [vmem:[#allocation4 + $0x40] sm:$0xff]
        %v1500 = vld [vmem:[#allocation4 + $0x48] sm:$0xff]
        %v1501 = vld [vmem:[#allocation4 + $0x50] sm:$0xff]
        %v1502 = vld [vmem:[#allocation4 + $0x58] sm:$0xff]
        %v1503 = vld [vmem:[#allocation4 + $0x60] sm:$0xff]
        %v1504 = vld [vmem:[#allocation4 + $0x68] sm:$0xff]
        %v1505 = vld [vmem:[#allocation4 + $0x70] sm:$0xff]
        %v1506 = vld [vmem:[#allocation4 + $0x78] sm:$0xff]
        %v1507 = vmul.f32 %v1332, %v1491
        %v1508 = vmul.f32 %v1334, %v1492
        %v1509 = vmul.f32 %v1336, %v1493
        %v1510 = vmul.f32 %v1338, %v1494
        %v1511 = vmul.f32 %v1340, %v1495
        %v1512 = vmul.f32 %v1342, %v1496
        %v1513 = vmul.f32 %v1344, %v1497
        %v1514 = vmul.f32 %v1346, %v1498
        %v1515 = vmul.f32 %v1348, %v1499
        %v1516 = vmul.f32 %v1350, %v1500
        %v1517 = vmul.f32 %v1352, %v1501
        %v1518 = vmul.f32 %v1354, %v1502
        %v1519 = vmul.f32 %v1356, %v1503
        %v1520 = vmul.f32 %v1358, %v1504
        %v1521 = vmul.f32 %v1360, %v1505
        %v1522 = vmul.f32 %v1362, %v1506
        %1523 = vadd.xlane.f32.xlu0 %v1460
        %v1524 = vpop.xlane.xlu0 %1523
        %1525 = vadd.xlane.f32.xlu0 %v1462
        %v1526 = vpop.xlane.xlu0 %1525
        %1527 = vadd.xlane.f32.xlu0 %v1464
        %v1528 = vpop.xlane.xlu0 %1527
        %1529 = vadd.xlane.f32.xlu0 %v1466
        %v1530 = vpop.xlane.xlu0 %1529
        %1531 = vadd.xlane.f32.xlu0 %v1468
        %v1532 = vpop.xlane.xlu0 %1531
        %1533 = vadd.xlane.f32.xlu0 %v1470
        %v1534 = vpop.xlane.xlu0 %1533
        %1535 = vadd.xlane.f32.xlu0 %v1472
        %v1536 = vpop.xlane.xlu0 %1535
        %1537 = vadd.xlane.f32.xlu0 %v1474
        %v1538 = vpop.xlane.xlu0 %1537
        %1539 = vadd.xlane.f32.xlu0 %v1476
        %v1540 = vpop.xlane.xlu0 %1539
        %1541 = vadd.xlane.f32.xlu0 %v1478
        %v1542 = vpop.xlane.xlu0 %1541
        %1543 = vadd.xlane.f32.xlu0 %v1480
        %v1544 = vpop.xlane.xlu0 %1543
        %1545 = vadd.xlane.f32.xlu0 %v1482
        %v1546 = vpop.xlane.xlu0 %1545
        %1547 = vadd.xlane.f32.xlu0 %v1484
        %v1548 = vpop.xlane.xlu0 %1547
        %1549 = vadd.xlane.f32.xlu0 %v1486
        %v1550 = vpop.xlane.xlu0 %1549
        %1551 = vadd.xlane.f32.xlu0 %v1488
        %v1552 = vpop.xlane.xlu0 %1551
        %1553 = vadd.xlane.f32.xlu0 %v1490
        %v1554 = vpop.xlane.xlu0 %1553
        %v1555 = vadd.f32 %v1507, %v1524
        %v1556 = vadd.f32 %v1508, %v1526
        %v1557 = vadd.f32 %v1509, %v1528
        %v1558 = vadd.f32 %v1510, %v1530
        %v1559 = vadd.f32 %v1511, %v1532
        %v1560 = vadd.f32 %v1512, %v1534
        %v1561 = vadd.f32 %v1513, %v1536
        %v1562 = vadd.f32 %v1514, %v1538
        %v1563 = vadd.f32 %v1515, %v1540
        %v1564 = vadd.f32 %v1516, %v1542
        %v1565 = vadd.f32 %v1517, %v1544
        %v1566 = vadd.f32 %v1518, %v1546
        %v1567 = vadd.f32 %v1519, %v1548
        %v1568 = vadd.f32 %v1520, %v1550
        %v1569 = vadd.f32 %v1521, %v1552
        %v1570 = vadd.f32 %v1522, %v1554
        %vm1571 = vcmask 7168
        %1572 = vst.msk [vmem:[#allocation4] sm:$0xff] %vm1571, %v1555
        %1573 = vst.msk [vmem:[#allocation4 + $0x8] sm:$0xff] %vm1571, %v1556
        %1574 = vst.msk [vmem:[#allocation4 + $0x10] sm:$0xff] %vm1571, %v1557
        %1575 = vst.msk [vmem:[#allocation4 + $0x18] sm:$0xff] %vm1571, %v1558
        %1576 = vst.msk [vmem:[#allocation4 + $0x20] sm:$0xff] %vm1571, %v1559
        %1577 = vst.msk [vmem:[#allocation4 + $0x28] sm:$0xff] %vm1571, %v1560
        %1578 = vst.msk [vmem:[#allocation4 + $0x30] sm:$0xff] %vm1571, %v1561
        %1579 = vst.msk [vmem:[#allocation4 + $0x38] sm:$0xff] %vm1571, %v1562
        %1580 = vst.msk [vmem:[#allocation4 + $0x40] sm:$0xff] %vm1571, %v1563
        %1581 = vst.msk [vmem:[#allocation4 + $0x48] sm:$0xff] %vm1571, %v1564
        %1582 = vst.msk [vmem:[#allocation4 + $0x50] sm:$0xff] %vm1571, %v1565
        %1583 = vst.msk [vmem:[#allocation4 + $0x58] sm:$0xff] %vm1571, %v1566
        %1584 = vst.msk [vmem:[#allocation4 + $0x60] sm:$0xff] %vm1571, %v1567
        %1585 = vst.msk [vmem:[#allocation4 + $0x68] sm:$0xff] %vm1571, %v1568
        %1586 = vst.msk [vmem:[#allocation4 + $0x70] sm:$0xff] %vm1571, %v1569
        %1587 = vst.msk [vmem:[#allocation4 + $0x78] sm:$0xff] %vm1571, %v1570
        %v1588 = vld [vmem:[#allocation5] sm:$0xff]
        %v1589 = vld [vmem:[#allocation5 + $0x8] sm:$0xff]
        %v1590 = vld [vmem:[#allocation5 + $0x10] sm:$0xff]
        %v1591 = vld [vmem:[#allocation5 + $0x18] sm:$0xff]
        %v1592 = vld [vmem:[#allocation5 + $0x20] sm:$0xff]
        %v1593 = vld [vmem:[#allocation5 + $0x28] sm:$0xff]
        %v1594 = vld [vmem:[#allocation5 + $0x30] sm:$0xff]
        %v1595 = vld [vmem:[#allocation5 + $0x38] sm:$0xff]
        %v1596 = vld [vmem:[#allocation5 + $0x40] sm:$0xff]
        %v1597 = vld [vmem:[#allocation5 + $0x48] sm:$0xff]
        %v1598 = vld [vmem:[#allocation5 + $0x50] sm:$0xff]
        %v1599 = vld [vmem:[#allocation5 + $0x58] sm:$0xff]
        %v1600 = vld [vmem:[#allocation5 + $0x60] sm:$0xff]
        %v1601 = vld [vmem:[#allocation5 + $0x68] sm:$0xff]
        %v1602 = vld [vmem:[#allocation5 + $0x70] sm:$0xff]
        %v1603 = vld [vmem:[#allocation5 + $0x78] sm:$0xff]
        %1605 = vset.pattern.permute.xlu0 0
        %1606 = vperm.xlu0 %1605, %v1332
        %v1607 = vpop.permute.xlu0 %1606
        %1610 = vset.pattern.permute.xlu0 0
        %1611 = vperm.xlu0 %1610, %v1334
        %v1612 = vpop.permute.xlu0 %1611
        %1615 = vset.pattern.permute.xlu0 0
        %1616 = vperm.xlu0 %1615, %v1336
        %v1617 = vpop.permute.xlu0 %1616
        %1620 = vset.pattern.permute.xlu0 0
        %1621 = vperm.xlu0 %1620, %v1338
        %v1622 = vpop.permute.xlu0 %1621
        %1625 = vset.pattern.permute.xlu0 0
        %1626 = vperm.xlu0 %1625, %v1340
        %v1627 = vpop.permute.xlu0 %1626
        %1630 = vset.pattern.permute.xlu0 0
        %1631 = vperm.xlu0 %1630, %v1342
        %v1632 = vpop.permute.xlu0 %1631
        %1635 = vset.pattern.permute.xlu0 0
        %1636 = vperm.xlu0 %1635, %v1344
        %v1637 = vpop.permute.xlu0 %1636
        %1640 = vset.pattern.permute.xlu0 0
        %1641 = vperm.xlu0 %1640, %v1346
        %v1642 = vpop.permute.xlu0 %1641
        %1645 = vset.pattern.permute.xlu0 0
        %1646 = vperm.xlu0 %1645, %v1348
        %v1647 = vpop.permute.xlu0 %1646
        %1650 = vset.pattern.permute.xlu0 0
        %1651 = vperm.xlu0 %1650, %v1350
        %v1652 = vpop.permute.xlu0 %1651
        %1655 = vset.pattern.permute.xlu0 0
        %1656 = vperm.xlu0 %1655, %v1352
        %v1657 = vpop.permute.xlu0 %1656
        %1660 = vset.pattern.permute.xlu0 0
        %1661 = vperm.xlu0 %1660, %v1354
        %v1662 = vpop.permute.xlu0 %1661
        %1665 = vset.pattern.permute.xlu0 0
        %1666 = vperm.xlu0 %1665, %v1356
        %v1667 = vpop.permute.xlu0 %1666
        %1670 = vset.pattern.permute.xlu0 0
        %1671 = vperm.xlu0 %1670, %v1358
        %v1672 = vpop.permute.xlu0 %1671
        %1675 = vset.pattern.permute.xlu0 0
        %1676 = vperm.xlu0 %1675, %v1360
        %v1677 = vpop.permute.xlu0 %1676
        %1680 = vset.pattern.permute.xlu0 0
        %1681 = vperm.xlu0 %1680, %v1362
        %v1682 = vpop.permute.xlu0 %1681
        %v1684 = vmul.f32 %v1607, %v1588
        %v1685 = vmul.f32 %v1612, %v1589
        %v1686 = vmul.f32 %v1617, %v1590
        %v1687 = vmul.f32 %v1622, %v1591
        %v1688 = vmul.f32 %v1627, %v1592
        %v1689 = vmul.f32 %v1632, %v1593
        %v1690 = vmul.f32 %v1637, %v1594
        %v1691 = vmul.f32 %v1642, %v1595
        %v1692 = vmul.f32 %v1647, %v1596
        %v1693 = vmul.f32 %v1652, %v1597
        %v1694 = vmul.f32 %v1657, %v1598
        %v1695 = vmul.f32 %v1662, %v1599
        %v1696 = vmul.f32 %v1667, %v1600
        %v1697 = vmul.f32 %v1672, %v1601
        %v1698 = vmul.f32 %v1677, %v1602
        %v1699 = vmul.f32 %v1682, %v1603
        %v1700 = vpack.c.bf16 %v1462, %v1460
        %v1701 = vpack.c.bf16 %v1466, %v1464
        %v1702 = vpack.c.bf16 %v1470, %v1468
        %v1703 = vpack.c.bf16 %v1474, %v1472
        %v1704 = vpack.c.bf16 %v1478, %v1476
        %v1705 = vpack.c.bf16 %v1482, %v1480
        %v1706 = vpack.c.bf16 %v1486, %v1484
        %v1707 = vpack.c.bf16 %v1490, %v1488
        %v1708 = vpack.c.bf16 %v819, %v816
        %v1709 = vpack.c.bf16 %v827, %v824
        %v1710 = vpack.c.bf16 %v835, %v832
        %v1711 = vpack.c.bf16 %v843, %v840
        %v1712 = vpack.c.bf16 %v851, %v848
        %v1713 = vpack.c.bf16 %v859, %v856
        %v1714 = vpack.c.bf16 %v867, %v864
        %v1715 = vpack.c.bf16 %v875, %v872
        %1716 = vmatprep.subr.bf16.mxu0 0
        %1717 = vmatpush1.bf16.msra.mxu0 %v1708
        %1718 = vmatprep.subr.bf16.mxu0 0
        %1719 = vmatpush1.bf16.msra.mxu0 %v1709
        %1720 = vmatprep.subr.bf16.mxu0 0
        %1721 = vmatpush1.bf16.msra.mxu0 %v1710
        %1722 = vmatprep.subr.bf16.mxu0 0
        %1723 = vmatpush1.bf16.msra.mxu0 %v1711
        %1724 = vmatprep.subr.bf16.mxu0 0
        %1725 = vmatpush1.bf16.msra.mxu0 %v1712
        %1726 = vmatprep.subr.bf16.mxu0 0
        %1727 = vmatpush1.bf16.msra.mxu0 %v1713
        %1728 = vmatprep.subr.bf16.mxu0 0
        %1729 = vmatpush1.bf16.msra.mxu0 %v1714
        %1730 = vmatprep.subr.bf16.mxu0 0
        %1731 = vmatpush1.bf16.msra.mxu0 %v1715
        %1732 = vmatprep.subr.bf16.mxu0 0
        %1733 = vmatpush1.bf16.msra.mxu0 0
        %1734 = vmatprep.subr.bf16.mxu0 0
        %1735 = vmatpush1.bf16.msra.mxu0 0
        %1736 = vmatprep.subr.bf16.mxu0 0
        %1737 = vmatpush1.bf16.msra.mxu0 0
        %1738 = vmatprep.subr.bf16.mxu0 0
        %1739 = vmatpush1.bf16.msra.mxu0 0
        %1740 = vmatprep.subr.bf16.mxu0 0
        %1741 = vmatpush1.bf16.msra.mxu0 0
        %1742 = vmatprep.subr.bf16.mxu0 0
        %1743 = vmatpush1.bf16.msra.mxu0 0
        %1744 = vmatprep.subr.bf16.mxu0 0
        %1745 = vmatpush1.bf16.msra.mxu0 0
        %1746 = vmatprep.subr.bf16.mxu0 0
        %1747 = vmatpush1.bf16.msra.mxu0 0
        %1748 = vmatprep.mubr.bf16.mxu0 0
        %1749 = vmatmul.mubr.bf16.gmra.mrb[0].mxu0 %v1700
        %v1750 = vpop.f32.mrb[0].mxu0
        %v1751 = vadd.f32 0.0, %v1750
        %v1752 = vpop.f32.mrb[0].mxu0
        %v1753 = vpop.f32.mrb[0].mxu0
        %v1754 = vadd.f32 0.0, %v1753
        %v1755 = vpop.f32.mrb[0].mxu0
        %1756 = vmatprep.mubr.bf16.mxu0 0
        %1757 = vmatmul.mubr.bf16.gmra.mrb[0].mxu0 %v1701
        %v1758 = vpop.f32.mrb[0].mxu0
        %v1759 = vadd.f32 0.0, %v1758
        %v1760 = vpop.f32.mrb[0].mxu0
        %v1761 = vpop.f32.mrb[0].mxu0
        %v1762 = vadd.f32 0.0, %v1761
        %v1763 = vpop.f32.mrb[0].mxu0
        %1764 = vmatprep.mubr.bf16.mxu0 0
        %1765 = vmatmul.mubr.bf16.gmra.mrb[0].mxu0 %v1702
        %v1766 = vpop.f32.mrb[0].mxu0
        %v1767 = vadd.f32 0.0, %v1766
        %v1768 = vpop.f32.mrb[0].mxu0
        %v1769 = vpop.f32.mrb[0].mxu0
        %v1770 = vadd.f32 0.0, %v1769
        %v1771 = vpop.f32.mrb[0].mxu0
        %1772 = vmatprep.mubr.bf16.mxu0 0
        %1773 = vmatmul.mubr.bf16.gmra.mrb[0].mxu0 %v1703
        %v1774 = vpop.f32.mrb[0].mxu0
        %v1775 = vadd.f32 0.0, %v1774
        %v1776 = vpop.f32.mrb[0].mxu0
        %v1777 = vpop.f32.mrb[0].mxu0
        %v1778 = vadd.f32 0.0, %v1777
        %v1779 = vpop.f32.mrb[0].mxu0
        %1780 = vmatprep.mubr.bf16.mxu0 0
        %1781 = vmatmul.mubr.bf16.gmra.mrb[0].mxu0 %v1704
        %v1782 = vpop.f32.mrb[0].mxu0
        %v1783 = vadd.f32 0.0, %v1782
        %v1784 = vpop.f32.mrb[0].mxu0
        %v1785 = vpop.f32.mrb[0].mxu0
        %v1786 = vadd.f32 0.0, %v1785
        %v1787 = vpop.f32.mrb[0].mxu0
        %1788 = vmatprep.mubr.bf16.mxu0 0
        %1789 = vmatmul.mubr.bf16.gmra.mrb[0].mxu0 %v1705
        %v1790 = vpop.f32.mrb[0].mxu0
        %v1791 = vadd.f32 0.0, %v1790
        %v1792 = vpop.f32.mrb[0].mxu0
        %v1793 = vpop.f32.mrb[0].mxu0
        %v1794 = vadd.f32 0.0, %v1793
        %v1795 = vpop.f32.mrb[0].mxu0
        %1796 = vmatprep.mubr.bf16.mxu0 0
        %1797 = vmatmul.mubr.bf16.gmra.mrb[0].mxu0 %v1706
        %v1798 = vpop.f32.mrb[0].mxu0
        %v1799 = vadd.f32 0.0, %v1798
        %v1800 = vpop.f32.mrb[0].mxu0
        %v1801 = vpop.f32.mrb[0].mxu0
        %v1802 = vadd.f32 0.0, %v1801
        %v1803 = vpop.f32.mrb[0].mxu0
        %1804 = vmatprep.mubr.bf16.mxu0 0
        %1805 = vmatmul.mubr.bf16.gmra.mrb[0].mxu0 %v1707
        %v1806 = vpop.f32.mrb[0].mxu0
        %v1807 = vadd.f32 0.0, %v1806
        %v1808 = vpop.f32.mrb[0].mxu0
        %v1809 = vpop.f32.mrb[0].mxu0
        %v1810 = vadd.f32 0.0, %v1809
        %v1811 = vpop.f32.mrb[0].mxu0
        %1812 = vdwg.mxu0
        %v1813 = vadd.f32 %v1684, %v1751
        %v1814 = vadd.f32 %v1685, %v1754
        %v1815 = vadd.f32 %v1686, %v1759
        %v1816 = vadd.f32 %v1687, %v1762
        %v1817 = vadd.f32 %v1688, %v1767
        %v1818 = vadd.f32 %v1689, %v1770
        %v1819 = vadd.f32 %v1690, %v1775
        %v1820 = vadd.f32 %v1691, %v1778
        %v1821 = vadd.f32 %v1692, %v1783
        %v1822 = vadd.f32 %v1693, %v1786
        %v1823 = vadd.f32 %v1694, %v1791
        %v1824 = vadd.f32 %v1695, %v1794
        %v1825 = vadd.f32 %v1696, %v1799
        %v1826 = vadd.f32 %v1697, %v1802
        %v1827 = vadd.f32 %v1698, %v1807
        %v1828 = vadd.f32 %v1699, %v1810
        %1829 = vst.msk [vmem:[#allocation5] sm:$0xff] %vm756, %v1813
        %1830 = vst.msk [vmem:[#allocation5 + $0x8] sm:$0xff] %vm756, %v1814
        %1831 = vst.msk [vmem:[#allocation5 + $0x10] sm:$0xff] %vm756, %v1815
        %1832 = vst.msk [vmem:[#allocation5 + $0x18] sm:$0xff] %vm756, %v1816
        %1833 = vst.msk [vmem:[#allocation5 + $0x20] sm:$0xff] %vm756, %v1817
        %1834 = vst.msk [vmem:[#allocation5 + $0x28] sm:$0xff] %vm756, %v1818
        %1835 = vst.msk [vmem:[#allocation5 + $0x30] sm:$0xff] %vm756, %v1819
        %1836 = vst.msk [vmem:[#allocation5 + $0x38] sm:$0xff] %vm756, %v1820
        %1837 = vst.msk [vmem:[#allocation5 + $0x40] sm:$0xff] %vm756, %v1821
        %1838 = vst.msk [vmem:[#allocation5 + $0x48] sm:$0xff] %vm756, %v1822
        %1839 = vst.msk [vmem:[#allocation5 + $0x50] sm:$0xff] %vm756, %v1823
        %1840 = vst.msk [vmem:[#allocation5 + $0x58] sm:$0xff] %vm756, %v1824
        %1841 = vst.msk [vmem:[#allocation5 + $0x60] sm:$0xff] %vm756, %v1825
        %1842 = vst.msk [vmem:[#allocation5 + $0x68] sm:$0xff] %vm756, %v1826
        %1843 = vst.msk [vmem:[#allocation5 + $0x70] sm:$0xff] %vm756, %v1827
        %1844 = vst.msk [vmem:[#allocation5 + $0x78] sm:$0xff] %vm756, %v1828
        %1845 = vst.msk [vmem:[#allocation3] sm:$0xff] %vm1571, %v1299
        %1846 = vst.msk [vmem:[#allocation3 + $0x8] sm:$0xff] %vm1571, %v1300
        %1847 = vst.msk [vmem:[#allocation3 + $0x10] sm:$0xff] %vm1571, %v1301
        %1848 = vst.msk [vmem:[#allocation3 + $0x18] sm:$0xff] %vm1571, %v1302
        %1849 = vst.msk [vmem:[#allocation3 + $0x20] sm:$0xff] %vm1571, %v1303
        %1850 = vst.msk [vmem:[#allocation3 + $0x28] sm:$0xff] %vm1571, %v1304
        %1851 = vst.msk [vmem:[#allocation3 + $0x30] sm:$0xff] %vm1571, %v1305
        %1852 = vst.msk [vmem:[#allocation3 + $0x38] sm:$0xff] %vm1571, %v1306
        %1853 = vst.msk [vmem:[#allocation3 + $0x40] sm:$0xff] %vm1571, %v1307
        %1854 = vst.msk [vmem:[#allocation3 + $0x48] sm:$0xff] %vm1571, %v1308
        %1855 = vst.msk [vmem:[#allocation3 + $0x50] sm:$0xff] %vm1571, %v1309
        %1856 = vst.msk [vmem:[#allocation3 + $0x58] sm:$0xff] %vm1571, %v1310
        %1857 = vst.msk [vmem:[#allocation3 + $0x60] sm:$0xff] %vm1571, %v1311
        %1858 = vst.msk [vmem:[#allocation3 + $0x68] sm:$0xff] %vm1571, %v1312
        %1859 = vst.msk [vmem:[#allocation3 + $0x70] sm:$0xff] %vm1571, %v1313
        %1860 = vst.msk [vmem:[#allocation3 + $0x78] sm:$0xff] %vm1571, %v1314
        %p1861 = scmp.eq.s32.totalorder %s28, 1
        // Predicated region
        $region94: #{tpu_custom_call.1} parent=84 // pred_check
          %p1862 = pneg %p1861
        $region95: #{tpu_custom_call.1} parent=84 // pred_check_branch
          %1864 = sbr.rel (%p1862) target = $region97
        $region96: #{tpu_custom_call.1} parent=84 // pred_region
          %v1865 = vld [vmem:[#allocation5] sm:$0xff]
          %v1866 = vld [vmem:[#allocation5 + $0x8] sm:$0xff]
          %v1867 = vld [vmem:[#allocation5 + $0x10] sm:$0xff]
          %v1868 = vld [vmem:[#allocation5 + $0x18] sm:$0xff]
          %v1869 = vld [vmem:[#allocation5 + $0x20] sm:$0xff]
          %v1870 = vld [vmem:[#allocation5 + $0x28] sm:$0xff]
          %v1871 = vld [vmem:[#allocation5 + $0x30] sm:$0xff]
          %v1872 = vld [vmem:[#allocation5 + $0x38] sm:$0xff]
          %v1873 = vld [vmem:[#allocation5 + $0x40] sm:$0xff]
          %v1874 = vld [vmem:[#allocation5 + $0x48] sm:$0xff]
          %v1875 = vld [vmem:[#allocation5 + $0x50] sm:$0xff]
          %v1876 = vld [vmem:[#allocation5 + $0x58] sm:$0xff]
          %v1877 = vld [vmem:[#allocation5 + $0x60] sm:$0xff]
          %v1878 = vld [vmem:[#allocation5 + $0x68] sm:$0xff]
          %v1879 = vld [vmem:[#allocation5 + $0x70] sm:$0xff]
          %v1880 = vld [vmem:[#allocation5 + $0x78] sm:$0xff]
          %v1881 = vld [vmem:[#allocation4] sm:$0xff]
          %v1882 = vld [vmem:[#allocation4 + $0x8] sm:$0xff]
          %v1883 = vld [vmem:[#allocation4 + $0x10] sm:$0xff]
          %v1884 = vld [vmem:[#allocation4 + $0x18] sm:$0xff]
          %v1885 = vld [vmem:[#allocation4 + $0x20] sm:$0xff]
          %v1886 = vld [vmem:[#allocation4 + $0x28] sm:$0xff]
          %v1887 = vld [vmem:[#allocation4 + $0x30] sm:$0xff]
          %v1888 = vld [vmem:[#allocation4 + $0x38] sm:$0xff]
          %v1889 = vld [vmem:[#allocation4 + $0x40] sm:$0xff]
          %v1890 = vld [vmem:[#allocation4 + $0x48] sm:$0xff]
          %v1891 = vld [vmem:[#allocation4 + $0x50] sm:$0xff]
          %v1892 = vld [vmem:[#allocation4 + $0x58] sm:$0xff]
          %v1893 = vld [vmem:[#allocation4 + $0x60] sm:$0xff]
          %v1894 = vld [vmem:[#allocation4 + $0x68] sm:$0xff]
          %v1895 = vld [vmem:[#allocation4 + $0x70] sm:$0xff]
          %v1896 = vld [vmem:[#allocation4 + $0x78] sm:$0xff]
          %v1897 = vrcp.pop %v1881
          %v1898 = vrcp.pop %v1882
          %v1899 = vrcp.pop %v1883
          %v1900 = vrcp.pop %v1884
          %v1901 = vrcp.pop %v1885
          %v1902 = vrcp.pop %v1886
          %v1903 = vrcp.pop %v1887
          %v1904 = vrcp.pop %v1888
          %v1905 = vrcp.pop %v1889
          %v1906 = vrcp.pop %v1890
          %v1907 = vrcp.pop %v1891
          %v1908 = vrcp.pop %v1892
          %v1909 = vrcp.pop %v1893
          %v1910 = vrcp.pop %v1894
          %v1911 = vrcp.pop %v1895
          %v1912 = vrcp.pop %v1896
          %1914 = vset.pattern.permute.xlu0 0
          %1915 = vperm.xlu0 %1914, %v1897
          %v1916 = vpop.permute.xlu0 %1915
          %1919 = vset.pattern.permute.xlu0 0
          %1920 = vperm.xlu0 %1919, %v1898
          %v1921 = vpop.permute.xlu0 %1920
          %1924 = vset.pattern.permute.xlu0 0
          %1925 = vperm.xlu0 %1924, %v1899
          %v1926 = vpop.permute.xlu0 %1925
          %1929 = vset.pattern.permute.xlu0 0
          %1930 = vperm.xlu0 %1929, %v1900
          %v1931 = vpop.permute.xlu0 %1930
          %1934 = vset.pattern.permute.xlu0 0
          %1935 = vperm.xlu0 %1934, %v1901
          %v1936 = vpop.permute.xlu0 %1935
          %1939 = vset.pattern.permute.xlu0 0
          %1940 = vperm.xlu0 %1939, %v1902
          %v1941 = vpop.permute.xlu0 %1940
          %1944 = vset.pattern.permute.xlu0 0
          %1945 = vperm.xlu0 %1944, %v1903
          %v1946 = vpop.permute.xlu0 %1945
          %1949 = vset.pattern.permute.xlu0 0
          %1950 = vperm.xlu0 %1949, %v1904
          %v1951 = vpop.permute.xlu0 %1950
          %1954 = vset.pattern.permute.xlu0 0
          %1955 = vperm.xlu0 %1954, %v1905
          %v1956 = vpop.permute.xlu0 %1955
          %1959 = vset.pattern.permute.xlu0 0
          %1960 = vperm.xlu0 %1959, %v1906
          %v1961 = vpop.permute.xlu0 %1960
          %1964 = vset.pattern.permute.xlu0 0
          %1965 = vperm.xlu0 %1964, %v1907
          %v1966 = vpop.permute.xlu0 %1965
          %1969 = vset.pattern.permute.xlu0 0
          %1970 = vperm.xlu0 %1969, %v1908
          %v1971 = vpop.permute.xlu0 %1970
          %1974 = vset.pattern.permute.xlu0 0
          %1975 = vperm.xlu0 %1974, %v1909
          %v1976 = vpop.permute.xlu0 %1975
          %1979 = vset.pattern.permute.xlu0 0
          %1980 = vperm.xlu0 %1979, %v1910
          %v1981 = vpop.permute.xlu0 %1980
          %1984 = vset.pattern.permute.xlu0 0
          %1985 = vperm.xlu0 %1984, %v1911
          %v1986 = vpop.permute.xlu0 %1985
          %1989 = vset.pattern.permute.xlu0 0
          %1990 = vperm.xlu0 %1989, %v1912
          %v1991 = vpop.permute.xlu0 %1990
          %v1993 = vmul.f32 %v1865, %v1916
          %v1994 = vmul.f32 %v1866, %v1921
          %v1995 = vmul.f32 %v1867, %v1926
          %v1996 = vmul.f32 %v1868, %v1931
          %v1997 = vmul.f32 %v1869, %v1936
          %v1998 = vmul.f32 %v1870, %v1941
          %v1999 = vmul.f32 %v1871, %v1946
          %v2000 = vmul.f32 %v1872, %v1951
          %v2001 = vmul.f32 %v1873, %v1956
          %v2002 = vmul.f32 %v1874, %v1961
          %v2003 = vmul.f32 %v1875, %v1966
          %v2004 = vmul.f32 %v1876, %v1971
          %v2005 = vmul.f32 %v1877, %v1976
          %v2006 = vmul.f32 %v1878, %v1981
          %v2007 = vmul.f32 %v1879, %v1986
          %v2008 = vmul.f32 %v1880, %v1991
          %vm2009 = vcmp.gt.f32.partialorder %v1993, 0.0
          %vm2010 = vcmp.gt.f32.partialorder %v1994, 0.0
          %vm2011 = vcmp.gt.f32.partialorder %v1995, 0.0
          %vm2012 = vcmp.gt.f32.partialorder %v1996, 0.0
          %vm2013 = vcmp.gt.f32.partialorder %v1997, 0.0
          %vm2014 = vcmp.gt.f32.partialorder %v1998, 0.0
          %vm2015 = vcmp.gt.f32.partialorder %v1999, 0.0
          %vm2016 = vcmp.gt.f32.partialorder %v2000, 0.0
          %vm2017 = vcmp.gt.f32.partialorder %v2001, 0.0
          %vm2018 = vcmp.gt.f32.partialorder %v2002, 0.0
          %vm2019 = vcmp.gt.f32.partialorder %v2003, 0.0
          %vm2020 = vcmp.gt.f32.partialorder %v2004, 0.0
          %vm2021 = vcmp.gt.f32.partialorder %v2005, 0.0
          %vm2022 = vcmp.gt.f32.partialorder %v2006, 0.0
          %vm2023 = vcmp.gt.f32.partialorder %v2007, 0.0
          %vm2024 = vcmp.gt.f32.partialorder %v2008, 0.0
          %v2025 = vmin.f32 %v1993, 0.0
          %v2026 = vmin.f32 %v1994, 0.0
          %v2027 = vmin.f32 %v1995, 0.0
          %v2028 = vmin.f32 %v1996, 0.0
          %v2029 = vmin.f32 %v1997, 0.0
          %v2030 = vmin.f32 %v1998, 0.0
          %v2031 = vmin.f32 %v1999, 0.0
          %v2032 = vmin.f32 %v2000, 0.0
          %v2033 = vmin.f32 %v2001, 0.0
          %v2034 = vmin.f32 %v2002, 0.0
          %v2035 = vmin.f32 %v2003, 0.0
          %v2036 = vmin.f32 %v2004, 0.0
          %v2037 = vmin.f32 %v2005, 0.0
          %v2038 = vmin.f32 %v2006, 0.0
          %v2039 = vmin.f32 %v2007, 0.0
          %v2040 = vmin.f32 %v2008, 0.0
          %v2041 = vmul.f32 %v2025, 1.442695
          %v2042 = vpow.pop %v2041
          %v2043 = vmul.f32 %v2026, 1.442695
          %v2044 = vpow.pop %v2043
          %v2045 = vmul.f32 %v2027, 1.442695
          %v2046 = vpow.pop %v2045
          %v2047 = vmul.f32 %v2028, 1.442695
          %v2048 = vpow.pop %v2047
          %v2049 = vmul.f32 %v2029, 1.442695
          %v2050 = vpow.pop %v2049
          %v2051 = vmul.f32 %v2030, 1.442695
          %v2052 = vpow.pop %v2051
          %v2053 = vmul.f32 %v2031, 1.442695
          %v2054 = vpow.pop %v2053
          %v2055 = vmul.f32 %v2032, 1.442695
          %v2056 = vpow.pop %v2055
          %v2057 = vmul.f32 %v2033, 1.442695
          %v2058 = vpow.pop %v2057
          %v2059 = vmul.f32 %v2034, 1.442695
          %v2060 = vpow.pop %v2059
          %v2061 = vmul.f32 %v2035, 1.442695
          %v2062 = vpow.pop %v2061
          %v2063 = vmul.f32 %v2036, 1.442695
          %v2064 = vpow.pop %v2063
          %v2065 = vmul.f32 %v2037, 1.442695
          %v2066 = vpow.pop %v2065
          %v2067 = vmul.f32 %v2038, 1.442695
          %v2068 = vpow.pop %v2067
          %v2069 = vmul.f32 %v2039, 1.442695
          %v2070 = vpow.pop %v2069
          %v2071 = vmul.f32 %v2040, 1.442695
          %v2072 = vpow.pop %v2071
          %v2073 = vsub.f32 %v2042, 1.0
          %v2074 = vsub.f32 %v2044, 1.0
          %v2075 = vsub.f32 %v2046, 1.0
          %v2076 = vsub.f32 %v2048, 1.0
          %v2077 = vsub.f32 %v2050, 1.0
          %v2078 = vsub.f32 %v2052, 1.0
          %v2079 = vsub.f32 %v2054, 1.0
          %v2080 = vsub.f32 %v2056, 1.0
          %v2081 = vsub.f32 %v2058, 1.0
          %v2082 = vsub.f32 %v2060, 1.0
          %v2083 = vsub.f32 %v2062, 1.0
          %v2084 = vsub.f32 %v2064, 1.0
          %v2085 = vsub.f32 %v2066, 1.0
          %v2086 = vsub.f32 %v2068, 1.0
          %v2087 = vsub.f32 %v2070, 1.0
          %v2088 = vsub.f32 %v2072, 1.0
          %v2089 = vsel %vm2009, %v1993, %v2073
          %v2090 = vsel %vm2010, %v1994, %v2074
          %v2091 = vsel %vm2011, %v1995, %v2075
          %v2092 = vsel %vm2012, %v1996, %v2076
          %v2093 = vsel %vm2013, %v1997, %v2077
          %v2094 = vsel %vm2014, %v1998, %v2078
          %v2095 = vsel %vm2015, %v1999, %v2079
          %v2096 = vsel %vm2016, %v2000, %v2080
          %v2097 = vsel %vm2017, %v2001, %v2081
          %v2098 = vsel %vm2018, %v2002, %v2082
          %v2099 = vsel %vm2019, %v2003, %v2083
          %v2100 = vsel %vm2020, %v2004, %v2084
          %v2101 = vsel %vm2021, %v2005, %v2085
          %v2102 = vsel %vm2022, %v2006, %v2086
          %v2103 = vsel %vm2023, %v2007, %v2087
          %v2104 = vsel %vm2024, %v2008, %v2088
          %v2105 = vpack.c.bf16 %v2090, %v2089
          %v2106 = vpack.c.bf16 %v2092, %v2091
          %v2107 = vpack.c.bf16 %v2094, %v2093
          %v2108 = vpack.c.bf16 %v2096, %v2095
          %v2109 = vpack.c.bf16 %v2098, %v2097
          %v2110 = vpack.c.bf16 %v2100, %v2099
          %v2111 = vpack.c.bf16 %v2102, %v2101
          %v2112 = vpack.c.bf16 %v2104, %v2103
          %v2113 = vld [vmem:[%s6] sm:$0xf]
          %v2114 = vld [vmem:[%s6 + $0x4] sm:$0xf]
          %v2115 = vld [vmem:[%s6 + $0x8] sm:$0xf]
          %v2116 = vld [vmem:[%s6 + $0xc] sm:$0xf]
          %v2121 = vunpack.c.l.b16 %v2113
          %v2122 = vunpack.c.l.b16 %v2114
          %v2123 = vunpack.c.l.b16 %v2115
          %v2124 = vunpack.c.l.b16 %v2116
          %v2125 = vpack.c.b16 %v2122, %v2121
          %v2126 = vpack.c.b16 %v2124, %v2123
          %v2130 = vsel %vm756, %v2105, 0
          %v2133 = vsel %vm756, %v2106, 0
          %v2136 = vsel %vm756, %v2107, 0
          %v2139 = vsel %vm756, %v2108, 0
          %v2142 = vsel %vm756, %v2109, 0
          %v2145 = vsel %vm756, %v2110, 0
          %v2148 = vsel %vm756, %v2111, 0
          %v2151 = vsel %vm756, %v2112, 0
          %2153 = vmatprep.subr.bf16.mxu0 0
          %2154 = vmatpush1.bf16.msra.mxu0 %v2125
          %2155 = vmatprep.subr.bf16.mxu0 0
          %2156 = vmatpush1.bf16.msra.mxu0 %v2126
          %2157 = vmatprep.subr.bf16.mxu0 0
          %2158 = vmatpush1.bf16.msra.mxu0 0
          %2159 = vmatprep.subr.bf16.mxu0 0
          %2160 = vmatpush1.bf16.msra.mxu0 0
          %2161 = vmatprep.subr.bf16.mxu0 0
          %2162 = vmatpush1.bf16.msra.mxu0 0
          %2163 = vmatprep.subr.bf16.mxu0 0
          %2164 = vmatpush1.bf16.msra.mxu0 0
          %2165 = vmatprep.subr.bf16.mxu0 0
          %2166 = vmatpush1.bf16.msra.mxu0 0
          %2167 = vmatprep.subr.bf16.mxu0 0
          %2168 = vmatpush1.bf16.msra.mxu0 0
          %2169 = vmatprep.subr.bf16.mxu0 0
          %2170 = vmatpush1.bf16.msra.mxu0 0
          %2171 = vmatprep.subr.bf16.mxu0 0
          %2172 = vmatpush1.bf16.msra.mxu0 0
          %2173 = vmatprep.subr.bf16.mxu0 0
          %2174 = vmatpush1.bf16.msra.mxu0 0
          %2175 = vmatprep.subr.bf16.mxu0 0
          %2176 = vmatpush1.bf16.msra.mxu0 0
          %2177 = vmatprep.subr.bf16.mxu0 0
          %2178 = vmatpush1.bf16.msra.mxu0 0
          %2179 = vmatprep.subr.bf16.mxu0 0
          %2180 = vmatpush1.bf16.msra.mxu0 0
          %2181 = vmatprep.subr.bf16.mxu0 0
          %2182 = vmatpush1.bf16.msra.mxu0 0
          %2183 = vmatprep.subr.bf16.mxu0 0
          %2184 = vmatpush1.bf16.msra.mxu0 0
          %2185 = vmatprep.mubr.bf16.mxu0 0
          %2186 = vmatmul.mubr.bf16.gmra.mrb[0].mxu0 %v2130
          %v2187 = vpop.f32.mrb[0].mxu0
          %v2188 = vadd.f32 0.0, %v2187
          %v2189 = vpop.f32.mrb[0].mxu0
          %v2190 = vpop.f32.mrb[0].mxu0
          %v2191 = vadd.f32 0.0, %v2190
          %v2192 = vpop.f32.mrb[0].mxu0
          %2193 = vmatprep.mubr.bf16.mxu0 0
          %2194 = vmatmul.mubr.bf16.gmra.mrb[0].mxu0 %v2133
          %v2195 = vpop.f32.mrb[0].mxu0
          %v2196 = vadd.f32 0.0, %v2195
          %v2197 = vpop.f32.mrb[0].mxu0
          %v2198 = vpop.f32.mrb[0].mxu0
          %v2199 = vadd.f32 0.0, %v2198
          %v2200 = vpop.f32.mrb[0].mxu0
          %2201 = vmatprep.mubr.bf16.mxu0 0
          %2202 = vmatmul.mubr.bf16.gmra.mrb[0].mxu0 %v2136
          %v2203 = vpop.f32.mrb[0].mxu0
          %v2204 = vadd.f32 0.0, %v2203
          %v2205 = vpop.f32.mrb[0].mxu0
          %v2206 = vpop.f32.mrb[0].mxu0
          %v2207 = vadd.f32 0.0, %v2206
          %v2208 = vpop.f32.mrb[0].mxu0
          %2209 = vmatprep.mubr.bf16.mxu0 0
          %2210 = vmatmul.mubr.bf16.gmra.mrb[0].mxu0 %v2139
          %v2211 = vpop.f32.mrb[0].mxu0
          %v2212 = vadd.f32 0.0, %v2211
          %v2213 = vpop.f32.mrb[0].mxu0
          %v2214 = vpop.f32.mrb[0].mxu0
          %v2215 = vadd.f32 0.0, %v2214
          %v2216 = vpop.f32.mrb[0].mxu0
          %2217 = vmatprep.mubr.bf16.mxu0 0
          %2218 = vmatmul.mubr.bf16.gmra.mrb[0].mxu0 %v2142
          %v2219 = vpop.f32.mrb[0].mxu0
          %v2220 = vadd.f32 0.0, %v2219
          %v2221 = vpop.f32.mrb[0].mxu0
          %v2222 = vpop.f32.mrb[0].mxu0
          %v2223 = vadd.f32 0.0, %v2222
          %v2224 = vpop.f32.mrb[0].mxu0
          %2225 = vmatprep.mubr.bf16.mxu0 0
          %2226 = vmatmul.mubr.bf16.gmra.mrb[0].mxu0 %v2145
          %v2227 = vpop.f32.mrb[0].mxu0
          %v2228 = vadd.f32 0.0, %v2227
          %v2229 = vpop.f32.mrb[0].mxu0
          %v2230 = vpop.f32.mrb[0].mxu0
          %v2231 = vadd.f32 0.0, %v2230
          %v2232 = vpop.f32.mrb[0].mxu0
          %2233 = vmatprep.mubr.bf16.mxu0 0
          %2234 = vmatmul.mubr.bf16.gmra.mrb[0].mxu0 %v2148
          %v2235 = vpop.f32.mrb[0].mxu0
          %v2236 = vadd.f32 0.0, %v2235
          %v2237 = vpop.f32.mrb[0].mxu0
          %v2238 = vpop.f32.mrb[0].mxu0
          %v2239 = vadd.f32 0.0, %v2238
          %v2240 = vpop.f32.mrb[0].mxu0
          %2241 = vmatprep.mubr.bf16.mxu0 0
          %2242 = vmatmul.mubr.bf16.gmra.mrb[0].mxu0 %v2151
          %v2243 = vpop.f32.mrb[0].mxu0
          %v2244 = vadd.f32 0.0, %v2243
          %v2245 = vpop.f32.mrb[0].mxu0
          %v2246 = vpop.f32.mrb[0].mxu0
          %v2247 = vadd.f32 0.0, %v2246
          %v2248 = vpop.f32.mrb[0].mxu0
          %2249 = vdwg.mxu0
          %v2250 = vld [vmem:[#allocation3] sm:$0xff]
          %v2251 = vld [vmem:[#allocation3 + $0x8] sm:$0xff]
          %v2252 = vld [vmem:[#allocation3 + $0x10] sm:$0xff]
          %v2253 = vld [vmem:[#allocation3 + $0x18] sm:$0xff]
          %v2254 = vld [vmem:[#allocation3 + $0x20] sm:$0xff]
          %v2255 = vld [vmem:[#allocation3 + $0x28] sm:$0xff]
          %v2256 = vld [vmem:[#allocation3 + $0x30] sm:$0xff]
          %v2257 = vld [vmem:[#allocation3 + $0x38] sm:$0xff]
          %v2258 = vld [vmem:[#allocation3 + $0x40] sm:$0xff]
          %v2259 = vld [vmem:[#allocation3 + $0x48] sm:$0xff]
          %v2260 = vld [vmem:[#allocation3 + $0x50] sm:$0xff]
          %v2261 = vld [vmem:[#allocation3 + $0x58] sm:$0xff]
          %v2262 = vld [vmem:[#allocation3 + $0x60] sm:$0xff]
          %v2263 = vld [vmem:[#allocation3 + $0x68] sm:$0xff]
          %v2264 = vld [vmem:[#allocation3 + $0x70] sm:$0xff]
          %v2265 = vld [vmem:[#allocation3 + $0x78] sm:$0xff]
          %2282 = vrot.lane.b32.xlu0 %v2250, 32
          %v2283 = vpop.permute.xlu0 %2282
          %2284 = vrot.lane.b32.xlu0 %v2251, 32
          %v2285 = vpop.permute.xlu0 %2284
          %2286 = vrot.lane.b32.xlu0 %v2252, 32
          %v2287 = vpop.permute.xlu0 %2286
          %2288 = vrot.lane.b32.xlu0 %v2253, 32
          %v2289 = vpop.permute.xlu0 %2288
          %2290 = vrot.lane.b32.xlu0 %v2254, 32
          %v2291 = vpop.permute.xlu0 %2290
          %2292 = vrot.lane.b32.xlu0 %v2255, 32
          %v2293 = vpop.permute.xlu0 %2292
          %2294 = vrot.lane.b32.xlu0 %v2256, 32
          %v2295 = vpop.permute.xlu0 %2294
          %2296 = vrot.lane.b32.xlu0 %v2257, 32
          %v2297 = vpop.permute.xlu0 %2296
          %2298 = vrot.lane.b32.xlu0 %v2258, 32
          %v2299 = vpop.permute.xlu0 %2298
          %2300 = vrot.lane.b32.xlu0 %v2259, 32
          %v2301 = vpop.permute.xlu0 %2300
          %2302 = vrot.lane.b32.xlu0 %v2260, 32
          %v2303 = vpop.permute.xlu0 %2302
          %2304 = vrot.lane.b32.xlu0 %v2261, 32
          %v2305 = vpop.permute.xlu0 %2304
          %2306 = vrot.lane.b32.xlu0 %v2262, 32
          %v2307 = vpop.permute.xlu0 %2306
          %2308 = vrot.lane.b32.xlu0 %v2263, 32
          %v2309 = vpop.permute.xlu0 %2308
          %2310 = vrot.lane.b32.xlu0 %v2264, 32
          %v2311 = vpop.permute.xlu0 %2310
          %2312 = vrot.lane.b32.xlu0 %v2265, 32
          %v2313 = vpop.permute.xlu0 %2312
          %2346 = vrot.lane.b32.xlu0 %v1881, 33
          %v2347 = vpop.permute.xlu0 %2346
          %2348 = vrot.lane.b32.xlu0 %v1882, 33
          %v2349 = vpop.permute.xlu0 %2348
          %2350 = vrot.lane.b32.xlu0 %v1883, 33
          %v2351 = vpop.permute.xlu0 %2350
          %2352 = vrot.lane.b32.xlu0 %v1884, 33
          %v2353 = vpop.permute.xlu0 %2352
          %2354 = vrot.lane.b32.xlu0 %v1885, 33
          %v2355 = vpop.permute.xlu0 %2354
          %2356 = vrot.lane.b32.xlu0 %v1886, 33
          %v2357 = vpop.permute.xlu0 %2356
          %2358 = vrot.lane.b32.xlu0 %v1887, 33
          %v2359 = vpop.permute.xlu0 %2358
          %2360 = vrot.lane.b32.xlu0 %v1888, 33
          %v2361 = vpop.permute.xlu0 %2360
          %2362 = vrot.lane.b32.xlu0 %v1889, 33
          %v2363 = vpop.permute.xlu0 %2362
          %2364 = vrot.lane.b32.xlu0 %v1890, 33
          %v2365 = vpop.permute.xlu0 %2364
          %2366 = vrot.lane.b32.xlu0 %v1891, 33
          %v2367 = vpop.permute.xlu0 %2366
          %2368 = vrot.lane.b32.xlu0 %v1892, 33
          %v2369 = vpop.permute.xlu0 %2368
          %2370 = vrot.lane.b32.xlu0 %v1893, 33
          %v2371 = vpop.permute.xlu0 %2370
          %2372 = vrot.lane.b32.xlu0 %v1894, 33
          %v2373 = vpop.permute.xlu0 %2372
          %2374 = vrot.lane.b32.xlu0 %v1895, 33
          %v2375 = vpop.permute.xlu0 %2374
          %2376 = vrot.lane.b32.xlu0 %v1896, 33
          %v2377 = vpop.permute.xlu0 %2376
          %v2394 = vsel %vm756, %v1993, %v2283
          %v2395 = vsel %vm756, %v1994, %v2285
          %v2396 = vsel %vm756, %v1995, %v2287
          %v2397 = vsel %vm756, %v1996, %v2289
          %v2398 = vsel %vm756, %v1997, %v2291
          %v2399 = vsel %vm756, %v1998, %v2293
          %v2400 = vsel %vm756, %v1999, %v2295
          %v2401 = vsel %vm756, %v2000, %v2297
          %v2402 = vsel %vm756, %v2001, %v2299
          %v2403 = vsel %vm756, %v2002, %v2301
          %v2404 = vsel %vm756, %v2003, %v2303
          %v2405 = vsel %vm756, %v2004, %v2305
          %v2406 = vsel %vm756, %v2005, %v2307
          %v2407 = vsel %vm756, %v2006, %v2309
          %v2408 = vsel %vm756, %v2007, %v2311
          %v2409 = vsel %vm756, %v2008, %v2313
          %vm2410 = vcmask 269312
          %v2411 = vsel %vm2410, %v2394, %v2347
          %v2412 = vsel %vm2410, %v2395, %v2349
          %v2413 = vsel %vm2410, %v2396, %v2351
          %v2414 = vsel %vm2410, %v2397, %v2353
          %v2415 = vsel %vm2410, %v2398, %v2355
          %v2416 = vsel %vm2410, %v2399, %v2357
          %v2417 = vsel %vm2410, %v2400, %v2359
          %v2418 = vsel %vm2410, %v2401, %v2361
          %v2419 = vsel %vm2410, %v2402, %v2363
          %v2420 = vsel %vm2410, %v2403, %v2365
          %v2421 = vsel %vm2410, %v2404, %v2367
          %v2422 = vsel %vm2410, %v2405, %v2369
          %v2423 = vsel %vm2410, %v2406, %v2371
          %v2424 = vsel %vm2410, %v2407, %v2373
          %v2425 = vsel %vm2410, %v2408, %v2375
          %v2426 = vsel %vm2410, %v2409, %v2377
          %vm2427 = vcmask 277504
          %v2428 = vsel %vm2427, %v2411, 0.0
          %v2429 = vsel %vm2427, %v2412, 0.0
          %v2430 = vsel %vm2427, %v2413, 0.0
          %v2431 = vsel %vm2427, %v2414, 0.0
          %v2432 = vsel %vm2427, %v2415, 0.0
          %v2433 = vsel %vm2427, %v2416, 0.0
          %v2434 = vsel %vm2427, %v2417, 0.0
          %v2435 = vsel %vm2427, %v2418, 0.0
          %v2436 = vsel %vm2427, %v2419, 0.0
          %v2437 = vsel %vm2427, %v2420, 0.0
          %v2438 = vsel %vm2427, %v2421, 0.0
          %v2439 = vsel %vm2427, %v2422, 0.0
          %v2440 = vsel %vm2427, %v2423, 0.0
          %v2441 = vsel %vm2427, %v2424, 0.0
          %v2442 = vsel %vm2427, %v2425, 0.0
          %v2443 = vsel %vm2427, %v2426, 0.0
          %2444 = vst [vmem:[%s454] sm:$0xff] %v2428
          %2445 = vst [vmem:[%s454 + $0x8] sm:$0xff] %v2429
          %2446 = vst [vmem:[%s454 + $0x10] sm:$0xff] %v2430
          %2447 = vst [vmem:[%s454 + $0x18] sm:$0xff] %v2431
          %2448 = vst [vmem:[%s454 + $0x20] sm:$0xff] %v2432
          %2449 = vst [vmem:[%s454 + $0x28] sm:$0xff] %v2433
          %2450 = vst [vmem:[%s454 + $0x30] sm:$0xff] %v2434
          %2451 = vst [vmem:[%s454 + $0x38] sm:$0xff] %v2435
          %2452 = vst [vmem:[%s454 + $0x40] sm:$0xff] %v2436
          %2453 = vst [vmem:[%s454 + $0x48] sm:$0xff] %v2437
          %2454 = vst [vmem:[%s454 + $0x50] sm:$0xff] %v2438
          %2455 = vst [vmem:[%s454 + $0x58] sm:$0xff] %v2439
          %2456 = vst [vmem:[%s454 + $0x60] sm:$0xff] %v2440
          %2457 = vst [vmem:[%s454 + $0x68] sm:$0xff] %v2441
          %2458 = vst [vmem:[%s454 + $0x70] sm:$0xff] %v2442
          %2459 = vst [vmem:[%s454 + $0x78] sm:$0xff] %v2443
          %v2460 = vpack.c.bf16 %v2191, %v2188
          %v2461 = vpack.c.bf16 %v2199, %v2196
          %v2462 = vpack.c.bf16 %v2207, %v2204
          %v2463 = vpack.c.bf16 %v2215, %v2212
          %v2464 = vpack.c.bf16 %v2223, %v2220
          %v2465 = vpack.c.bf16 %v2231, %v2228
          %v2466 = vpack.c.bf16 %v2239, %v2236
          %v2467 = vpack.c.bf16 %v2247, %v2244
          %v2476 = vunpack.c.l.b16 %v2460
          %v2477 = vunpack.c.h.b16 %v2460
          %v2478 = vunpack.c.l.b16 %v2461
          %v2479 = vunpack.c.h.b16 %v2461
          %v2480 = vunpack.c.l.b16 %v2462
          %v2481 = vunpack.c.h.b16 %v2462
          %v2482 = vunpack.c.l.b16 %v2463
          %v2483 = vunpack.c.h.b16 %v2463
          %v2484 = vunpack.c.l.b16 %v2464
          %v2485 = vunpack.c.h.b16 %v2464
          %v2486 = vunpack.c.l.b16 %v2465
          %v2487 = vunpack.c.h.b16 %v2465
          %v2488 = vunpack.c.l.b16 %v2466
          %v2489 = vunpack.c.h.b16 %v2466
          %v2490 = vunpack.c.l.b16 %v2467
          %v2491 = vunpack.c.h.b16 %v2467
          %v2492 = vpack.c.b16 %v2476, %v2476
          %v2493 = vpack.c.b16 %v2477, %v2477
          %v2494 = vpack.c.b16 %v2478, %v2478
          %v2495 = vpack.c.b16 %v2479, %v2479
          %v2496 = vpack.c.b16 %v2480, %v2480
          %v2497 = vpack.c.b16 %v2481, %v2481
          %v2498 = vpack.c.b16 %v2482, %v2482
          %v2499 = vpack.c.b16 %v2483, %v2483
          %v2500 = vpack.c.b16 %v2484, %v2484
          %v2501 = vpack.c.b16 %v2485, %v2485
          %v2502 = vpack.c.b16 %v2486, %v2486
          %v2503 = vpack.c.b16 %v2487, %v2487
          %v2504 = vpack.c.b16 %v2488, %v2488
          %v2505 = vpack.c.b16 %v2489, %v2489
          %v2506 = vpack.c.b16 %v2490, %v2490
          %v2507 = vpack.c.b16 %v2491, %v2491
          %vm2524 = vcmask 125952
          %2525 = vst.msk [vmem:[%s480] sm:$0xf] %vm2524, %v2492
          %2526 = vst.msk [vmem:[%s480 + $0x4] sm:$0xf] %vm2524, %v2493
          %2527 = vst.msk [vmem:[%s480 + $0x8] sm:$0xf] %vm2524, %v2494
          %2528 = vst.msk [vmem:[%s480 + $0xc] sm:$0xf] %vm2524, %v2495
          %2529 = vst.msk [vmem:[%s480 + $0x10] sm:$0xf] %vm2524, %v2496
          %2530 = vst.msk [vmem:[%s480 + $0x14] sm:$0xf] %vm2524, %v2497
          %2531 = vst.msk [vmem:[%s480 + $0x18] sm:$0xf] %vm2524, %v2498
          %2532 = vst.msk [vmem:[%s480 + $0x1c] sm:$0xf] %vm2524, %v2499
          %2533 = vst.msk [vmem:[%s480 + $0x20] sm:$0xf] %vm2524, %v2500
          %2534 = vst.msk [vmem:[%s480 + $0x24] sm:$0xf] %vm2524, %v2501
          %2535 = vst.msk [vmem:[%s480 + $0x28] sm:$0xf] %vm2524, %v2502
          %2536 = vst.msk [vmem:[%s480 + $0x2c] sm:$0xf] %vm2524, %v2503
          %2537 = vst.msk [vmem:[%s480 + $0x30] sm:$0xf] %vm2524, %v2504
          %2538 = vst.msk [vmem:[%s480 + $0x34] sm:$0xf] %vm2524, %v2505
          %2539 = vst.msk [vmem:[%s480 + $0x38] sm:$0xf] %vm2524, %v2506
          %2540 = vst.msk [vmem:[%s480 + $0x3c] sm:$0xf] %vm2524, %v2507
        $region97: #{tpu_custom_call.1} parent=84 // pred_fallthru
          _
        %s2541 = sand.u32 %s207, 1
        %s2542 = scalar_lea.sflag [#allocation8], %s2541
        %s2543 = sand.u32 %s207, 1
        %s2544 = smul.addr %s2543, 128
        %s2545 = scalar_lea.vmem [#allocation7], %s2544
        %s2546 = smul.u32 16, %s27
        %p2547 = scmp.lt.s32.totalorder %s2546, 31
        %s2548 = scalar_select %p2547, %s2546, 31
        %s2549 = smul.addr %s2548, 4
        %s2550 = scalar_lea.vmem %s8, %s2549
        // Predicated region
        $region98: #{tpu_custom_call.1} parent=84 // pred_check
          %p2551 = pneg %p217
        $region99: #{tpu_custom_call.1} parent=84 // pred_check_branch
          %2553 = sbr.rel (%p2551) target = $region101
        $region100: #{tpu_custom_call.1} parent=84 // pred_region
          %s2554 = smul.u32 16, %s27
          %s2556 = ssub.s32 2048, 2048
          %2557 = vsyncadd %s2542, %s2556
          %s2558 = smul.addr %s2554, 128
          %s2559 = scalar_lea.hbm %s7, %s2558
          %s2560 = sshll.u32 %s2545, 4
          %s2561 = int_to_ptr.vmem [resolvable:$true] %s2560
          %2566 = dma.vmem_to_hbm [thread:$0]  %s2561, 2048, %s2559, %s2542, 128, 128, 8
        $region101: #{tpu_custom_call.1} parent=84 // pred_fallthru
          _
        // Predicated region
        $region102: #{tpu_custom_call.1} parent=84 // pred_check
          %p2567 = pneg %p243
        $region103: #{tpu_custom_call.1} parent=84 // pred_check_branch
          %2569 = sbr.rel (%p2567) target = $region105
        $region104: #{tpu_custom_call.1} parent=84 // pred_region
          %s2570 = smul.u32 16, %s27
        $region105: #{tpu_custom_call.1} parent=84 // pred_fallthru
          _
      $region85: #{tpu_custom_call.1} parent=5 // pred_fallthru
        _
      %p2571 = scmp.le.s32.totalorder 2, %s18
      // Predicated region
      $region106: #{tpu_custom_call.1} parent=5 // pred_check
        %p2572 = pneg %p2571
      $region107: #{tpu_custom_call.1} parent=5 // pred_check_branch
        %2574 = sbr.rel (%p2572) target = $region109
      $region108: #{tpu_custom_call.1} parent=5 // pred_region
        %s2575 = ssub.s32 %s18, 2
        // Predicated region
        $region110: #{tpu_custom_call.1} parent=108 // pred_check
          %p2576 = pneg %p223
        $region111: #{tpu_custom_call.1} parent=108 // pred_check_branch
          %2578 = sbr.rel (%p2576) target = $region113
        $region112: #{tpu_custom_call.1} parent=108 // pred_region
          %s2579 = sand.u32 %s208, 1
          %s2580 = scalar_lea.sflag [#allocation8], %s2579
          %s2581 = sand.u32 %s208, 1
          %s2582 = smul.addr %s2581, 128
          %s2583 = scalar_lea.vmem [#allocation7], %s2582
          %2584 = dma.done %s2580, 2048
        $region113: #{tpu_custom_call.1} parent=108 // pred_fallthru
          _
        // Predicated region
        $region114: #{tpu_custom_call.1} parent=108 // pred_check
          %p2585 = pneg %p249
        $region115: #{tpu_custom_call.1} parent=108 // pred_check_branch
          %2587 = sbr.rel (%p2585) target = $region117
        $region116: #{tpu_custom_call.1} parent=108 // pred_region
          %s2588 = smul.u32 16, %s29
          %p2589 = scmp.lt.s32.totalorder %s2588, 31
          %s2590 = scalar_select %p2589, %s2588, 31
          %s2591 = smul.addr %s2590, 4
          %s2592 = scalar_lea.vmem %s8, %s2591
        $region117: #{tpu_custom_call.1} parent=108 // pred_fallthru
          _
      $region109: #{tpu_custom_call.1} parent=5 // pred_fallthru
        _
    $region6: #{tpu_custom_call.1} parent=1 // loop_footer
      %s22 = sadd.s32 1, %s18
    $region7: #{tpu_custom_call.1} parent=1 // loop_footer_branch
      %17 = sbr.rel target = $region3
    $region8: #{tpu_custom_call.1} parent=1 // loop_exit
      _
    %2593 = vsyncpa [#allocation8], 1
    %s2594 = scalar_lea.sflag [#allocation8], 1
    %2595 = vsyncpa %s2594, 1

</llo_original>
